<compile_context>
chip_gen: v7x
topology: tpu7x:2x2x1
jax: 0.10.0
libtpu: 0.0.40
codegen_flags: <defaults>
</compile_context>

<pallas_src>
import functools
import numpy as np
import jax
import jax.numpy as jnp
from jax.experimental import pallas as pl
from jax.experimental.pallas import tpu as pltpu

# -----------------------------------------------------------------------------
# Config (small synthetic sizes consistent with the module's constructor)
# -----------------------------------------------------------------------------
SEQ_DIM = 4        # K  (channels of the time series)
SEQ_LEN = 16       # L
HIDDEN = 32        # Discriminator d_hidden_dim
NUM_LABEL = 3
DIFF_STEPS = 8
GAN_LOSS_RATIO = 0.1

L1, L2, L3 = SEQ_LEN // 2, SEQ_LEN // 4, SEQ_LEN // 8   # 8, 4, 2 (k=5,s=2,p=2)
KL = SEQ_DIM * SEQ_LEN                                   # 64
H = HIDDEN
C1W, C2W, C3W = L1 * H, L2 * 2 * H, L3 * 4 * H           # 256, 256, 256
POOLW = 4 * H                                            # 128

# ---- activation slab layout (f32, width 384) --------------------------------
X_OFF, N_OFF, M_OFF, PN_OFF = 0, KL, 2 * KL, 3 * KL
C1_COL, C2_COL = 4 * KL, 4 * KL + 1
ACT_W = 4 * KL + 128                                     # 384

# ---- bias slab layout (f32, width 1024) --------------------------------------
B1_OFF, B2_OFF, B3_OFF = 0, 256, 512
FB1_OFF = 768            # fc1 bias padded to 128 lanes
LB1_OFF = 896            # LCM fc1 bias (64)
LB2_OFF = 960            # LCM fc2 bias (3)
FB2_OFF = 963            # disc fc2 bias (1)
BIAS_W = 1024

# ---- weight slab layouts (bf16) ----------------------------------------------
W1_OFF, LW1_OFF, LW2_OFF = 0, 256, 320                   # (64, 384)
W1L_W = 384
W2_OFF, W3_OFF, M2_OFF, M3_OFF, PAVG_OFF = 0, 256, 512, 768, 1024  # (256, 1152)
WB_W = 1152
FW1_OFF, FW2_OFF = 0, 128                                # (128, 256)
WF_W = 256

# ---- output slab layout (f32, width 256) --------------------------------------
DIFF_OFF = 0             # 2*KL = 128
XP_OFF = 2 * KL          # 64
DPROB_COL = XP_OFF + KL  # 192
LOGP_OFF = DPROB_COL + 1 # 193
OUT_W = 256


def _round_up(x, m):
    return ((x + m - 1) // m) * m


# -----------------------------------------------------------------------------
# Fused Pallas kernel
# -----------------------------------------------------------------------------
def fused_forward_kernel(acts_ref, bias_ref, w1l_ref, wb_ref, wf_ref, out_ref):
    f32 = jnp.float32
    bf16 = jnp.bfloat16

    a = acts_ref[...]                                    # (TB, 384) f32
    x = a[:, X_OFF:X_OFF + KL]
    n = a[:, N_OFF:N_OFF + KL]
    m = a[:, M_OFF:M_OFF + KL]
    pn = a[:, PN_OFF:PN_OFF + KL]
    c1 = a[:, C1_COL:C1_COL + 1]
    c2 = a[:, C2_COL:C2_COL + 1]

    # ---- q_sample + diffusion input (only_generate_missing branch) ----------
    xn = c1 * x + c2 * n                                  # x_noisy
    diff = jnp.concatenate([x * m, xn * (1.0 - m)], axis=-1)   # (TB, 2*KL)

    # ---- x_pred = (x_noisy - sqrt(1-ac_t)*eps_hat) / sqrt(ac_t) --------------
    c1r = pl.reciprocal(c1, approx=False)
    xp = (xn - c2 * pn) * c1r                             # (TB, KL)

    def mm(lhs_bf16, w_bf16):
        return jnp.dot(lhs_bf16, w_bf16, preferred_element_type=f32)

    def lrelu(h):                                         # nn.LeakyReLU(0.2)
        return jnp.where(h > 0, h, 0.2 * h)

    def inorm(z, mavg):
        # InstanceNorm1d (affine=False, eps=1e-5) over the length axis,
        # flat layout -> precomputed per-channel averaging matrix (bf16).
        mu = mm(z.astype(bf16), mavg)
        d = z - mu
        var = mm((d * d).astype(bf16), mavg)              # E[(x-mu)^2]
        return d * jax.lax.rsqrt(jnp.maximum(var, 0.0) + 1e-5)

    xpb = xp.astype(bf16)

    # ---- Discriminator -------------------------------------------------------
    h1 = lrelu(mm(xpb, w1l_ref[:, W1_OFF:W1_OFF + C1W])
               + bias_ref[:, B1_OFF:B1_OFF + C1W])
    z2 = (mm(h1.astype(bf16), wb_ref[:, W2_OFF:W2_OFF + C2W])
          + bias_ref[:, B2_OFF:B2_OFF + C2W])
    h2 = lrelu(inorm(z2, wb_ref[:, M2_OFF:M2_OFF + C2W]))
    z3 = (mm(h2.astype(bf16), wb_ref[:, W3_OFF:W3_OFF + C3W])
          + bias_ref[:, B3_OFF:B3_OFF + C3W])
    h3 = lrelu(inorm(z3, wb_ref[:, M3_OFF:M3_OFF + C3W]))
    pooled = mm(h3.astype(bf16), wb_ref[:, PAVG_OFF:PAVG_OFF + POOLW])  # AdaptiveAvgPool1d(1)
    f1 = jnp.maximum(mm(pooled.astype(bf16), wf_ref[:, FW1_OFF:FW1_OFF + 128])
                     + bias_ref[:, FB1_OFF:FB1_OFF + 128], 0.0)
    logit = (mm(f1.astype(bf16), wf_ref[:, FW2_OFF:FW2_OFF + 1])
             + bias_ref[:, FB2_OFF:FB2_OFF + 1])
    d_prob = jax.nn.sigmoid(logit)                        # (TB, 1)

    # ---- LCM fc head (fc1 -> fc2 -> log_softmax) -----------------------------
    # TODO(synk): TransformerEncoder (temporal_former) not in source; the fc
    # head is applied directly to x_pred (fc1 weights pre-permuted at init).
    hz = (mm(xpb, w1l_ref[:, LW1_OFF:LW1_OFF + 64])
          + bias_ref[:, LB1_OFF:LB1_OFF + 64])            # (TB, 64)
    zf = mm(hz.astype(bf16), w1l_ref[:, LW2_OFF:LW2_OFF + 64])
    z = zf[:, :NUM_LABEL] + bias_ref[:, LB2_OFF:LB2_OFF + NUM_LABEL]
    zmax = jnp.max(z, axis=-1, keepdims=True)
    lse = zmax + jnp.log(jnp.sum(jnp.exp(z - zmax), axis=-1, keepdims=True))
    logp = z - lse                                        # (TB, 3)

    # ---- single lane-dense output slab ---------------------------------------
    padw = OUT_W - (2 * KL + KL + 1 + NUM_LABEL)          # 60
    pad = jnp.zeros((xp.shape[0], padw), f32)
    out_ref[...] = jnp.concatenate([diff, xp, d_prob, logp, pad], axis=-1)


# -----------------------------------------------------------------------------
# Wrapper: one pallas_call for the whole fused forward
# -----------------------------------------------------------------------------
def fused_forward(params, data_f, noise_f, mask_f, pred_noise_f, c1, c2):
    B = data_f.shape[0]
    BP = _round_up(B, 8)
    if BP > 128:
        BP = _round_up(BP, 128)
        TB = 128
    else:
        TB = BP

    def padr(v, fill=0.0):
        if BP == B:
            return v
        return jnp.pad(v, ((0, BP - B), (0, 0)), constant_values=fill)

    lane_pad = jnp.zeros((BP, ACT_W - (4 * KL + 2)), jnp.float32)
    acts = jnp.concatenate(
        [padr(data_f), padr(noise_f), padr(mask_f), padr(pred_noise_f),
         padr(c1, 1.0), padr(c2), lane_pad], axis=-1)      # (BP, 384)

    bias, W1L, WB, WF = params['bias'], params['W1L'], params['WB'], params['WF']

    mm_flops_per_row = 2 * (KL * C1W + C2W * C2W + 2 * C2W * C2W + C3W * C3W
                            + 2 * C3W * C3W + C3W * POOLW + 128 * 128 + 128
                            + KL * 64 + 64 * 64)
    cost = pl.CostEstimate(
        flops=int(BP * mm_flops_per_row),
        transcendentals=int(BP * (C2W + C3W + 8)),
        bytes_accessed=int(acts.size * 4 + BP * OUT_W * 4 + bias.size * 4
                           + (W1L.size + WB.size + WF.size) * 2))

    out = pl.pallas_call(
        fused_forward_kernel,
        out_shape=jax.ShapeDtypeStruct((BP, OUT_W), jnp.float32),
        grid=(BP // TB,),
        in_specs=[
            pl.BlockSpec((TB, ACT_W), lambda i: (i, 0)),
            pl.BlockSpec((1, BIAS_W), lambda i: (0, 0)),
            pl.BlockSpec((KL, W1L_W), lambda i: (0, 0)),
            pl.BlockSpec((C1W, WB_W), lambda i: (0, 0)),
            pl.BlockSpec((POOLW, WF_W), lambda i: (0, 0)),
        ],
        out_specs=pl.BlockSpec((TB, OUT_W), lambda i: (i, 0)),
        compiler_params=pltpu.CompilerParams(
            dimension_semantics=("parallel",),
            vmem_limit_bytes=32 * 1024 * 1024),
        cost_estimate=cost,
    )(acts, bias, W1L, WB, WF)

    diff_f = out[:B, DIFF_OFF:DIFF_OFF + 2 * KL]
    x_pred_f = out[:B, XP_OFF:XP_OFF + KL]
    d_out = out[:B, DPROB_COL:DPROB_COL + 1]
    c_logprobs = out[:B, LOGP_OFF:LOGP_OFF + NUM_LABEL]
    return diff_f, x_pred_f, d_out, c_logprobs


# -----------------------------------------------------------------------------
# Parameters (deterministic init, im2col precomputation, slab packing)
# -----------------------------------------------------------------------------
def make_sel_matrix(L_in, L_out, ksize=5, stride=2, pad=2):
    """Selection tensors so strided padded Conv1d becomes a pure matmul."""
    S = np.zeros((ksize, L_out, L_in), np.float32)
    for k in range(ksize):
        for lo in range(L_out):
            j = stride * lo + k - pad
            if 0 <= j < L_in:
                S[k, lo, j] = 1.0
    return S


def init_params(key):
    ks = jax.random.split(key, 12)

    def rnd(k, shape, s):
        return np.asarray(jax.random.normal(k, shape, jnp.float32)) * s

    # raw conv weights (tap, C_in, C_out) + biases
    w1 = rnd(ks[0], (5, SEQ_DIM, H), 0.2);     b1 = rnd(ks[1], (H,), 0.05)
    w2 = rnd(ks[2], (5, H, 2 * H), 0.1);       b2 = rnd(ks[3], (2 * H,), 0.05)
    w3 = rnd(ks[4], (5, 2 * H, 4 * H), 0.05);  b3 = rnd(ks[5], (4 * H,), 0.05)

    S1 = make_sel_matrix(SEQ_LEN, L1)
    S2 = make_sel_matrix(L1, L2)
    S3 = make_sel_matrix(L2, L3)

    # im2col effective weights (one matmul per conv layer)
    W1 = np.einsum('koi,kcd->ciod', S1, w1).reshape(KL, C1W)        # in: (chan,len)
    W2 = np.einsum('koi,kcd->icod', S2, w2).reshape(C1W, C2W)       # in: (len,chan)
    W3 = np.einsum('koi,kcd->icod', S3, w3).reshape(C2W, C3W)

    # per-channel length-averaging matrices (InstanceNorm means) and avg-pool
    M2 = np.kron(np.ones((L2, L2), np.float32), np.eye(2 * H, dtype=np.float32)) / L2
    M3 = np.kron(np.ones((L3, L3), np.float32), np.eye(4 * H, dtype=np.float32)) / L3
    Pavg = np.tile(np.eye(4 * H, dtype=np.float32), (L3, 1)) / L3

    fw1 = rnd(ks[6], (4 * H, H), 0.05); fb1 = rnd(ks[7], (H,), 0.05)
    fw2 = rnd(ks[8], (H, 1), 0.1);      fb2 = rnd(ks[9], (1,), 0.05)

    # LCM head weights: fc1 rows nominally ordered (length, channel) — the
    # reference does x_pred.permute(0,2,1).view(B,-1).  Pre-permute rows so the
    # kernel consumes x_pred flattened as (channel, length) directly.
    lw1_lk = rnd(ks[10], (SEQ_LEN, SEQ_DIM, 64), 0.1)
    lw1 = np.transpose(lw1_lk, (1, 0, 2)).reshape(KL, 64)
    lb1 = np.zeros((64,), np.float32)
    lw2 = rnd(ks[11], (64, NUM_LABEL), 0.1)
    lb2 = np.zeros((NUM_LABEL,), np.float32)

    # ---- pack weight slabs (bf16) and the bias slab (f32) --------------------
    W1L = np.zeros((KL, W1L_W), np.float32)
    W1L[:, W1_OFF:W1_OFF + C1W] = W1
    W1L[:, LW1_OFF:LW1_OFF + 64] = lw1
    W1L[:, LW2_OFF:LW2_OFF + NUM_LABEL] = lw2

    WB = np.zeros((C1W, WB_W), np.float32)
    WB[:, W2_OFF:W2_OFF + C2W] = W2
    WB[:, W3_OFF:W3_OFF + C3W] = W3
    WB[:, M2_OFF:M2_OFF + C2W] = M2
    WB[:, M3_OFF:M3_OFF + C3W] = M3
    WB[:, PAVG_OFF:PAVG_OFF + POOLW] = Pavg

    WF = np.zeros((POOLW, WF_W), np.float32)
    WF[:, FW1_OFF:FW1_OFF + H] = fw1
    WF[:H, FW2_OFF] = fw2[:, 0]

    bias = np.zeros((1, BIAS_W), np.float32)
    bias[0, B1_OFF:B1_OFF + C1W] = np.tile(b1, L1)
    bias[0, B2_OFF:B2_OFF + C2W] = np.tile(b2, L2)
    bias[0, B3_OFF:B3_OFF + C3W] = np.tile(b3, L3)
    bias[0, FB1_OFF:FB1_OFF + H] = fb1
    bias[0, LB1_OFF:LB1_OFF + 64] = lb1
    bias[0, LB2_OFF:LB2_OFF + NUM_LABEL] = lb2
    bias[0, FB2_OFF] = fb2[0]

    return {
        'W1L': jnp.asarray(W1L, jnp.bfloat16),
        'WB': jnp.asarray(WB, jnp.bfloat16),
        'WF': jnp.asarray(WF, jnp.bfloat16),
        'bias': jnp.asarray(bias, jnp.float32),
    }


def make_diffusion_buffers(T, beta_start=1e-4, beta_end=0.02):
    betas = jnp.linspace(beta_start, beta_end, T, dtype=jnp.float32)   # 'linear'
    alphas = 1.0 - betas
    ac = jnp.cumprod(alphas)
    return {
        'betas': betas,
        'alphas_cumprod': ac,
        'sqrt_alphas_cumprod': jnp.sqrt(ac),
        'sqrt_one_minus_alphas_cumprod': jnp.sqrt(1.0 - ac),
        'sqrt_recip_alphas': jnp.sqrt(1.0 / alphas),
    }


# -----------------------------------------------------------------------------
# get_mask_rm — JAX glue (host-side numpy data prep in the reference):
# per-row random missing ratio + top-k masking of observed entries.
# -----------------------------------------------------------------------------
def get_mask_rm(key, obs_mask):
    B, K, L = obs_mask.shape
    n = K * L
    k_r, k_ratio = jax.random.split(key)
    r = (jax.random.uniform(k_r, obs_mask.shape) * obs_mask).reshape(B, n)
    ratio = jax.random.uniform(k_ratio, (B,))               # missing_ratio ~ U(0,1)
    num_obs = jnp.sum(obs_mask.reshape(B, n), axis=1)
    num_masked = jnp.round(num_obs * ratio).astype(jnp.int32)
    sorted_desc = -jnp.sort(-r, axis=1)
    idx = jnp.clip(num_masked - 1, 0, n - 1)[:, None]
    kth = jnp.take_along_axis(sorted_desc, idx, axis=1)      # k-th largest value
    kth = jnp.where(num_masked[:, None] > 0, kth, jnp.inf)
    keep = (r > 0) & (r < kth)                               # drop top-k observed
    return keep.reshape(B, K, L).astype(jnp.float32)


# -----------------------------------------------------------------------------
# Model.forward (mode='train') — fused Pallas kernel for the hot path,
# pure-JAX glue for the losses.
# -----------------------------------------------------------------------------
@functools.partial(jax.jit, static_argnums=())
def model_forward_train(params, buffers, data, obs_mask, key):
    B, K, L = data.shape
    k_t, k_noise, k_mask, k_pred = jax.random.split(key, 4)

    t = jax.random.randint(k_t, (B,), 0, DIFF_STEPS)
    noise = jax.random.normal(k_noise, data.shape, jnp.float32)
    mask = get_mask_rm(k_mask, obs_mask)

    c1 = buffers['sqrt_alphas_cumprod'][t].reshape(B, 1)
    c2 = buffers['sqrt_one_minus_alphas_cumprod'][t].reshape(B, 1)

    data_f = data.reshape(B, K * L)
    noise_f = noise.reshape(B, K * L)
    mask_f = mask.reshape(B, K * L)
    obs_f = obs_mask.reshape(B, K * L)

    # TODO(synk): TDM_Net denoiser is not provided in the source; placeholder.
    predicted_noise_f = jax.random.normal(k_pred, (B, K * L), jnp.float32)

    # Fused q_sample + diff_input + x_pred + Discriminator + LCM head.
    diff_f, x_pred_f, d_out, c_logprobs = fused_forward(
        params, data_f, noise_f, mask_f, predicted_noise_f, c1, c2)
    diff_input = diff_f.reshape(B, 2, K, L)
    x_pred = x_pred_f.reshape(B, K, L)

    # BCE vs. ones (PyTorch BCELoss clamps the log term at -100)
    d_loss = jnp.mean(jnp.minimum(-jnp.log(d_out), 100.0))

    # noise-prediction loss (only_generate_missing=True path)
    pred_mix = predicted_noise_f * (obs_f - mask_f) + noise_f * mask_f
    loss_mask = (obs_f - mask_f) > 0
    denom = jnp.maximum(jnp.sum(loss_mask), 1)
    f_loss = jnp.sum(jnp.where(loss_mask, (noise_f - pred_mix) ** 2, 0.0)) / denom

    loss = (1.0 - GAN_LOSS_RATIO) * f_loss + GAN_LOSS_RATIO * d_loss
    return {'c_logprobs': c_logprobs, 'd_out': d_out, 'diff_input': diff_input,
            'x_pred': x_pred, 'f_loss': f_loss, 'd_loss': d_loss, 'loss': loss}


# -----------------------------------------------------------------------------
if __name__ == "__main__":
    key = jax.random.PRNGKey(0)
    kd, km, kp, kf = jax.random.split(key, 4)

    B = 2
    data = jax.random.normal(kd, (B, SEQ_DIM, SEQ_LEN), jnp.float32)
    obs_mask = (jax.random.uniform(km, (B, SEQ_DIM, SEQ_LEN)) > 0.1
                ).astype(jnp.float32)

    params = init_params(kp)
    buffers = make_diffusion_buffers(DIFF_STEPS)

    out = model_forward_train(params, buffers, data, obs_mask, kf)
    out = jax.tree_util.tree_map(jax.block_until_ready, out)

    assert out['d_out'].shape == (B, 1)
    assert out['c_logprobs'].shape == (B, NUM_LABEL)
    assert out['x_pred'].shape == (B, SEQ_DIM, SEQ_LEN)
    assert out['diff_input'].shape == (B, 2, SEQ_DIM, SEQ_LEN)
    assert bool(jnp.all(jnp.isfinite(out['x_pred'])))
    assert bool(jnp.all(jnp.isfinite(out['loss'])))
    print("KERNEL_OK")
</pallas_src>

<mosaic_0001>
module attributes {stable_mosaic.version = 11 : i64} {
  func.func @fused_forward_kernel(%arg0: i32, %arg1: memref<8x384xf32, #tpu.memory_space<vmem>>, %arg2: memref<1x1024xf32, #tpu.memory_space<vmem>>, %arg3: memref<64x384xbf16, #tpu.memory_space<vmem>>, %arg4: memref<256x1152xbf16, #tpu.memory_space<vmem>>, %arg5: memref<128x256xbf16, #tpu.memory_space<vmem>>, %arg6: memref<8x256xf32, #tpu.memory_space<vmem>>) attributes {dimension_semantics = [#tpu.dimension_semantics<parallel>], iteration_bounds = array<i64: 1>, scalar_prefetch = 0 : i64, scratch_operands = 0 : i64, tpu.core_type = #tpu.core_type<tc>, window_params = [{transform_indices = @transform_0, window_bounds = array<i64: 8, 384>}, {pipeline_mode = #tpu.pipeline_mode<synchronous>, transform_indices = @transform_1, window_bounds = array<i64: 1, 1024>}, {pipeline_mode = #tpu.pipeline_mode<synchronous>, transform_indices = @transform_2, window_bounds = array<i64: 64, 384>}, {pipeline_mode = #tpu.pipeline_mode<synchronous>, transform_indices = @transform_3, window_bounds = array<i64: 256, 1152>}, {pipeline_mode = #tpu.pipeline_mode<synchronous>, transform_indices = @transform_4, window_bounds = array<i64: 128, 256>}, {transform_indices = @transform_5, window_bounds = array<i64: 8, 256>}]} {
    %c0 = arith.constant 0 : index
    %c0_0 = arith.constant 0 : index
    %0 = vector.load %arg1[%c0, %c0_0] : memref<8x384xf32, #tpu.memory_space<vmem>>, vector<8x384xf32>
    %1 = vector.extract_strided_slice %0 {offsets = [0, 0], sizes = [8, 64], strides = [1, 1]} : vector<8x384xf32> to vector<8x64xf32>
    %2 = vector.extract_strided_slice %0 {offsets = [0, 64], sizes = [8, 64], strides = [1, 1]} : vector<8x384xf32> to vector<8x64xf32>
    %3 = vector.extract_strided_slice %0 {offsets = [0, 128], sizes = [8, 64], strides = [1, 1]} : vector<8x384xf32> to vector<8x64xf32>
    %4 = vector.extract_strided_slice %0 {offsets = [0, 192], sizes = [8, 64], strides = [1, 1]} : vector<8x384xf32> to vector<8x64xf32>
    %5 = vector.extract_strided_slice %0 {offsets = [0, 256], sizes = [8, 1], strides = [1, 1]} : vector<8x384xf32> to vector<8x1xf32>
    %6 = vector.extract_strided_slice %0 {offsets = [0, 257], sizes = [8, 1], strides = [1, 1]} : vector<8x384xf32> to vector<8x1xf32>
    %7 = vector.broadcast %5 : vector<8x1xf32> to vector<8x64xf32>
    %8 = arith.mulf %7, %1 : vector<8x64xf32>
    %9 = vector.broadcast %6 : vector<8x1xf32> to vector<8x64xf32>
    %10 = arith.mulf %9, %2 : vector<8x64xf32>
    %11 = arith.addf %8, %10 : vector<8x64xf32>
    %12 = arith.mulf %1, %3 : vector<8x64xf32>
    %cst = arith.constant 1.000000e+00 : f32
    %13 = vector.broadcast %cst : f32 to vector<8x64xf32>
    %14 = arith.subf %13, %3 : vector<8x64xf32>
    %15 = arith.mulf %11, %14 : vector<8x64xf32>
    %16 = tpu.concatenate %12, %15 in 1 : vector<8x64xf32>, vector<8x64xf32> -> vector<8x128xf32>
    %17 = tpu.reciprocal %5 : vector<8x1xf32> -> vector<8x1xf32>
    %18 = vector.broadcast %6 : vector<8x1xf32> to vector<8x64xf32>
    %19 = arith.mulf %18, %4 : vector<8x64xf32>
    %20 = arith.subf %11, %19 : vector<8x64xf32>
    %21 = vector.broadcast %17 : vector<8x1xf32> to vector<8x64xf32>
    %22 = arith.mulf %20, %21 : vector<8x64xf32>
    %23 = arith.truncf %22 : vector<8x64xf32> to vector<8x64xbf16>
    %c0_1 = arith.constant 0 : index
    %c0_2 = arith.constant 0 : index
    %24 = vector.load %arg3[%c0_1, %c0_2] : memref<64x384xbf16, #tpu.memory_space<vmem>>, vector<64x256xbf16>
    %cst_3 = arith.constant dense<0.000000e+00> : vector<8x256xf32>
    %25 = tpu.matmul %23, %24, %cst_3 {dimension_numbers = #tpu.dot_dimension_numbers<[1], [0], [0], [1], [0, 0, 1, 1], [], []>} : vector<8x64xbf16>, vector<64x256xbf16>, vector<8x256xf32> -> vector<8x256xf32>
    %c0_4 = arith.constant 0 : index
    %c0_5 = arith.constant 0 : index
    %26 = vector.load %arg2[%c0_4, %c0_5] : memref<1x1024xf32, #tpu.memory_space<vmem>>, vector<1x256xf32>
    %27 = vector.broadcast %26 : vector<1x256xf32> to vector<8x256xf32>
    %28 = arith.addf %25, %27 : vector<8x256xf32>
    %cst_6 = arith.constant 0.000000e+00 : f32
    %29 = vector.broadcast %cst_6 : f32 to vector<8x256xf32>
    %30 = arith.cmpf ogt, %28, %29 : vector<8x256xf32>
    %cst_7 = arith.constant 2.000000e-01 : f32
    %31 = vector.broadcast %cst_7 : f32 to vector<8x256xf32>
    %32 = arith.mulf %31, %28 : vector<8x256xf32>
    %33 = arith.select %30, %28, %32 : vector<8x256xi1>, vector<8x256xf32>
    %34 = arith.truncf %33 : vector<8x256xf32> to vector<8x256xbf16>
    %c0_8 = arith.constant 0 : index
    %c0_9 = arith.constant 0 : index
    %35 = vector.load %arg4[%c0_8, %c0_9] : memref<256x1152xbf16, #tpu.memory_space<vmem>>, vector<256x256xbf16>
    %cst_10 = arith.constant dense<0.000000e+00> : vector<8x256xf32>
    %36 = tpu.matmul %34, %35, %cst_10 {dimension_numbers = #tpu.dot_dimension_numbers<[1], [0], [0], [1], [0, 0, 1, 1], [], []>} : vector<8x256xbf16>, vector<256x256xbf16>, vector<8x256xf32> -> vector<8x256xf32>
    %c0_11 = arith.constant 0 : index
    %c256 = arith.constant 256 : index
    %37 = vector.load %arg2[%c0_11, %c256] : memref<1x1024xf32, #tpu.memory_space<vmem>>, vector<1x256xf32>
    %38 = vector.broadcast %37 : vector<1x256xf32> to vector<8x256xf32>
    %39 = arith.addf %36, %38 : vector<8x256xf32>
    %c0_12 = arith.constant 0 : index
    %c512 = arith.constant 512 : index
    %40 = vector.load %arg4[%c0_12, %c512] : memref<256x1152xbf16, #tpu.memory_space<vmem>>, vector<256x256xbf16>
    %41 = arith.truncf %39 : vector<8x256xf32> to vector<8x256xbf16>
    %cst_13 = arith.constant dense<0.000000e+00> : vector<8x256xf32>
    %42 = tpu.matmul %41, %40, %cst_13 {dimension_numbers = #tpu.dot_dimension_numbers<[1], [0], [0], [1], [0, 0, 1, 1], [], []>} : vector<8x256xbf16>, vector<256x256xbf16>, vector<8x256xf32> -> vector<8x256xf32>
    %43 = arith.subf %39, %42 : vector<8x256xf32>
    %44 = arith.mulf %43, %43 : vector<8x256xf32>
    %45 = arith.truncf %44 : vector<8x256xf32> to vector<8x256xbf16>
    %cst_14 = arith.constant dense<0.000000e+00> : vector<8x256xf32>
    %46 = tpu.matmul %45, %40, %cst_14 {dimension_numbers = #tpu.dot_dimension_numbers<[1], [0], [0], [1], [0, 0, 1, 1], [], []>} : vector<8x256xbf16>, vector<256x256xbf16>, vector<8x256xf32> -> vector<8x256xf32>
    %cst_15 = arith.constant 0.000000e+00 : f32
    %47 = vector.broadcast %cst_15 : f32 to vector<8x256xf32>
    %48 = arith.maximumf %46, %47 : vector<8x256xf32>
    %cst_16 = arith.constant 9.99999974E-6 : f32
    %49 = vector.broadcast %cst_16 : f32 to vector<8x256xf32>
    %50 = arith.addf %48, %49 : vector<8x256xf32>
    %51 = math.rsqrt %50 : vector<8x256xf32>
    %52 = arith.mulf %43, %51 : vector<8x256xf32>
    %cst_17 = arith.constant 0.000000e+00 : f32
    %53 = vector.broadcast %cst_17 : f32 to vector<8x256xf32>
    %54 = arith.cmpf ogt, %52, %53 : vector<8x256xf32>
    %cst_18 = arith.constant 2.000000e-01 : f32
    %55 = vector.broadcast %cst_18 : f32 to vector<8x256xf32>
    %56 = arith.mulf %55, %52 : vector<8x256xf32>
    %57 = arith.select %54, %52, %56 : vector<8x256xi1>, vector<8x256xf32>
    %58 = arith.truncf %57 : vector<8x256xf32> to vector<8x256xbf16>
    %c0_19 = arith.constant 0 : index
    %c256_20 = arith.constant 256 : index
    %59 = vector.load %arg4[%c0_19, %c256_20] : memref<256x1152xbf16, #tpu.memory_space<vmem>>, vector<256x256xbf16>
    %cst_21 = arith.constant dense<0.000000e+00> : vector<8x256xf32>
    %60 = tpu.matmul %58, %59, %cst_21 {dimension_numbers = #tpu.dot_dimension_numbers<[1], [0], [0], [1], [0, 0, 1, 1], [], []>} : vector<8x256xbf16>, vector<256x256xbf16>, vector<8x256xf32> -> vector<8x256xf32>
    %c0_22 = arith.constant 0 : index
    %c512_23 = arith.constant 512 : index
    %61 = vector.load %arg2[%c0_22, %c512_23] : memref<1x1024xf32, #tpu.memory_space<vmem>>, vector<1x256xf32>
    %62 = vector.broadcast %61 : vector<1x256xf32> to vector<8x256xf32>
    %63 = arith.addf %60, %62 : vector<8x256xf32>
    %c0_24 = arith.constant 0 : index
    %c768 = arith.constant 768 : index
    %64 = vector.load %arg4[%c0_24, %c768] : memref<256x1152xbf16, #tpu.memory_space<vmem>>, vector<256x256xbf16>
    %65 = arith.truncf %63 : vector<8x256xf32> to vector<8x256xbf16>
    %cst_25 = arith.constant dense<0.000000e+00> : vector<8x256xf32>
    %66 = tpu.matmul %65, %64, %cst_25 {dimension_numbers = #tpu.dot_dimension_numbers<[1], [0], [0], [1], [0, 0, 1, 1], [], []>} : vector<8x256xbf16>, vector<256x256xbf16>, vector<8x256xf32> -> vector<8x256xf32>
    %67 = arith.subf %63, %66 : vector<8x256xf32>
    %68 = arith.mulf %67, %67 : vector<8x256xf32>
    %69 = arith.truncf %68 : vector<8x256xf32> to vector<8x256xbf16>
    %cst_26 = arith.constant dense<0.000000e+00> : vector<8x256xf32>
    %70 = tpu.matmul %69, %64, %cst_26 {dimension_numbers = #tpu.dot_dimension_numbers<[1], [0], [0], [1], [0, 0, 1, 1], [], []>} : vector<8x256xbf16>, vector<256x256xbf16>, vector<8x256xf32> -> vector<8x256xf32>
    %cst_27 = arith.constant 0.000000e+00 : f32
    %71 = vector.broadcast %cst_27 : f32 to vector<8x256xf32>
    %72 = arith.maximumf %70, %71 : vector<8x256xf32>
    %cst_28 = arith.constant 9.99999974E-6 : f32
    %73 = vector.broadcast %cst_28 : f32 to vector<8x256xf32>
    %74 = arith.addf %72, %73 : vector<8x256xf32>
    %75 = math.rsqrt %74 : vector<8x256xf32>
    %76 = arith.mulf %67, %75 : vector<8x256xf32>
    %cst_29 = arith.constant 0.000000e+00 : f32
    %77 = vector.broadcast %cst_29 : f32 to vector<8x256xf32>
    %78 = arith.cmpf ogt, %76, %77 : vector<8x256xf32>
    %cst_30 = arith.constant 2.000000e-01 : f32
    %79 = vector.broadcast %cst_30 : f32 to vector<8x256xf32>
    %80 = arith.mulf %79, %76 : vector<8x256xf32>
    %81 = arith.select %78, %76, %80 : vector<8x256xi1>, vector<8x256xf32>
    %82 = arith.truncf %81 : vector<8x256xf32> to vector<8x256xbf16>
    %c0_31 = arith.constant 0 : index
    %c1024 = arith.constant 1024 : index
    %83 = vector.load %arg4[%c0_31, %c1024] : memref<256x1152xbf16, #tpu.memory_space<vmem>>, vector<256x128xbf16>
    %cst_32 = arith.constant dense<0.000000e+00> : vector<8x128xf32>
    %84 = tpu.matmul %82, %83, %cst_32 {dimension_numbers = #tpu.dot_dimension_numbers<[1], [0], [0], [1], [0, 0, 1, 1], [], []>} : vector<8x256xbf16>, vector<256x128xbf16>, vector<8x128xf32> -> vector<8x128xf32>
    %85 = arith.truncf %84 : vector<8x128xf32> to vector<8x128xbf16>
    %c0_33 = arith.constant 0 : index
    %c0_34 = arith.constant 0 : index
    %86 = vector.load %arg5[%c0_33, %c0_34] : memref<128x256xbf16, #tpu.memory_space<vmem>>, vector<128x128xbf16>
    %cst_35 = arith.constant dense<0.000000e+00> : vector<8x128xf32>
    %87 = tpu.matmul %85, %86, %cst_35 {dimension_numbers = #tpu.dot_dimension_numbers<[1], [0], [0], [1], [0, 0, 1, 1], [], []>} : vector<8x128xbf16>, vector<128x128xbf16>, vector<8x128xf32> -> vector<8x128xf32>
    %c0_36 = arith.constant 0 : index
    %c768_37 = arith.constant 768 : index
    %88 = vector.load %arg2[%c0_36, %c768_37] : memref<1x1024xf32, #tpu.memory_space<vmem>>, vector<1x128xf32>
    %89 = vector.broadcast %88 : vector<1x128xf32> to vector<8x128xf32>
    %90 = arith.addf %87, %89 : vector<8x128xf32>
    %cst_38 = arith.constant 0.000000e+00 : f32
    %91 = vector.broadcast %cst_38 : f32 to vector<8x128xf32>
    %92 = arith.maximumf %90, %91 : vector<8x128xf32>
    %93 = arith.truncf %92 : vector<8x128xf32> to vector<8x128xbf16>
    %c0_39 = arith.constant 0 : index
    %c128 = arith.constant 128 : index
    %94 = vector.load %arg5[%c0_39, %c128] : memref<128x256xbf16, #tpu.memory_space<vmem>>, vector<128x1xbf16>
    %cst_40 = arith.constant dense<0.000000e+00> : vector<8x1xf32>
    %95 = tpu.matmul %93, %94, %cst_40 {dimension_numbers = #tpu.dot_dimension_numbers<[1], [0], [0], [1], [0, 0, 1, 1], [], []>} : vector<8x128xbf16>, vector<128x1xbf16>, vector<8x1xf32> -> vector<8x1xf32>
    %c0_41 = arith.constant 0 : index
    %c963 = arith.constant 963 : index
    %96 = vector.load %arg2[%c0_41, %c963] : memref<1x1024xf32, #tpu.memory_space<vmem>>, vector<1x1xf32>
    %97 = vector.broadcast %96 : vector<1x1xf32> to vector<8x1xf32>
    %98 = arith.addf %95, %97 : vector<8x1xf32>
    %99 = arith.negf %98 : vector<8x1xf32>
    %100 = math.exp %99 : vector<8x1xf32>
    %cst_42 = arith.constant 1.000000e+00 : f32
    %101 = vector.broadcast %cst_42 : f32 to vector<8x1xf32>
    %102 = arith.addf %101, %100 : vector<8x1xf32>
    %103 = arith.divf %101, %102 : vector<8x1xf32>
    %c0_43 = arith.constant 0 : index
    %c256_44 = arith.constant 256 : index
    %104 = vector.load %arg3[%c0_43, %c256_44] : memref<64x384xbf16, #tpu.memory_space<vmem>>, vector<64x64xbf16>
    %cst_45 = arith.constant dense<0.000000e+00> : vector<8x64xf32>
    %105 = tpu.matmul %23, %104, %cst_45 {dimension_numbers = #tpu.dot_dimension_numbers<[1], [0], [0], [1], [0, 0, 1, 1], [], []>} : vector<8x64xbf16>, vector<64x64xbf16>, vector<8x64xf32> -> vector<8x64xf32>
    %c0_46 = arith.constant 0 : index
    %c896 = arith.constant 896 : index
    %106 = vector.load %arg2[%c0_46, %c896] : memref<1x1024xf32, #tpu.memory_space<vmem>>, vector<1x64xf32>
    %107 = vector.broadcast %106 : vector<1x64xf32> to vector<8x64xf32>
    %108 = arith.addf %105, %107 : vector<8x64xf32>
    %109 = arith.truncf %108 : vector<8x64xf32> to vector<8x64xbf16>
    %c0_47 = arith.constant 0 : index
    %c320 = arith.constant 320 : index
    %110 = vector.load %arg3[%c0_47, %c320] : memref<64x384xbf16, #tpu.memory_space<vmem>>, vector<64x64xbf16>
    %cst_48 = arith.constant dense<0.000000e+00> : vector<8x64xf32>
    %111 = tpu.matmul %109, %110, %cst_48 {dimension_numbers = #tpu.dot_dimension_numbers<[1], [0], [0], [1], [0, 0, 1, 1], [], []>} : vector<8x64xbf16>, vector<64x64xbf16>, vector<8x64xf32> -> vector<8x64xf32>
    %112 = vector.extract_strided_slice %111 {offsets = [0, 0], sizes = [8, 3], strides = [1, 1]} : vector<8x64xf32> to vector<8x3xf32>
    %c0_49 = arith.constant 0 : index
    %c960 = arith.constant 960 : index
    %113 = vector.load %arg2[%c0_49, %c960] : memref<1x1024xf32, #tpu.memory_space<vmem>>, vector<1x3xf32>
    %114 = vector.broadcast %113 : vector<1x3xf32> to vector<8x3xf32>
    %115 = arith.addf %112, %114 : vector<8x3xf32>
    %cst_50 = arith.constant dense<0xFF800000> : vector<8xf32>
    %116 = vector.multi_reduction <maximumf>, %115, %cst_50 [1] : vector<8x3xf32> to vector<8xf32>
    %117 = vector.shape_cast %116 : vector<8xf32> to vector<8x1xf32>
    %118 = vector.broadcast %117 : vector<8x1xf32> to vector<8x3xf32>
    %119 = arith.subf %115, %118 : vector<8x3xf32>
    %120 = math.exp %119 : vector<8x3xf32>
    %cst_51 = arith.constant dense<0.000000e+00> : vector<8xf32>
    %121 = vector.multi_reduction <add>, %120, %cst_51 [1] : vector<8x3xf32> to vector<8xf32>
    %122 = vector.shape_cast %121 : vector<8xf32> to vector<8x1xf32>
    %123 = math.log %122 : vector<8x1xf32>
    %124 = arith.addf %117, %123 : vector<8x1xf32>
    %125 = vector.broadcast %124 : vector<8x1xf32> to vector<8x3xf32>
    %126 = arith.subf %115, %125 : vector<8x3xf32>
    %cst_52 = arith.constant 0.000000e+00 : f32
    %127 = vector.broadcast %cst_52 : f32 to vector<8x60xf32>
    %128 = tpu.concatenate %16, %22, %103, %126, %127 in 1 : vector<8x128xf32>, vector<8x64xf32>, vector<8x1xf32>, vector<8x3xf32>, vector<8x60xf32> -> vector<8x256xf32>
    %c0_53 = arith.constant 0 : index
    %c0_54 = arith.constant 0 : index
    %129 = vector.load %arg6[%c0_53, %c0_54] : memref<8x256xf32, #tpu.memory_space<vmem>>, vector<8x256xf32>
    tpu.vector_store %arg6[%c0_53, %c0_54], %128 {strides = array<i32>} : memref<8x256xf32, #tpu.memory_space<vmem>>, vector<8x256xf32>,
    return
  }
  func.func @transform_0(%arg0: i32) -> (i32, i32) {
    %c0_i32 = arith.constant 0 : i32
    %c0_i32_0 = arith.constant 0 : i32
    return %arg0, %c0_i32 : i32, i32
  }
  func.func @transform_1(%arg0: i32) -> (i32, i32) {
    %c0_i32 = arith.constant 0 : i32
    %c0_i32_0 = arith.constant 0 : i32
    %c0_i32_1 = arith.constant 0 : i32
    return %c0_i32, %c0_i32_0 : i32, i32
  }
  func.func @transform_2(%arg0: i32) -> (i32, i32) {
    %c0_i32 = arith.constant 0 : i32
    %c0_i32_0 = arith.constant 0 : i32
    %c0_i32_1 = arith.constant 0 : i32
    return %c0_i32, %c0_i32_0 : i32, i32
  }
  func.func @transform_3(%arg0: i32) -> (i32, i32) {
    %c0_i32 = arith.constant 0 : i32
    %c0_i32_0 = arith.constant 0 : i32
    %c0_i32_1 = arith.constant 0 : i32
    return %c0_i32, %c0_i32_0 : i32, i32
  }
  func.func @transform_4(%arg0: i32) -> (i32, i32) {
    %c0_i32 = arith.constant 0 : i32
    %c0_i32_0 = arith.constant 0 : i32
    %c0_i32_1 = arith.constant 0 : i32
    return %c0_i32, %c0_i32_0 : i32, i32
  }
  func.func @transform_5(%arg0: i32) -> (i32, i32) {
    %c0_i32 = arith.constant 0 : i32
    %c0_i32_0 = arith.constant 0 : i32
    return %arg0, %c0_i32 : i32, i32
  }
}

</mosaic_0001>

<llo_original>
// kernel: neg.4
$region0: #{neg.4}
  #allocation0 [shape = 's32[1]{0}', space=sflag, size = 0x4, scoped, tag = 'scoped memory for neg.4']
  %s0 = inlined_call_operand.vmem [shape: f32[2,64], index: 0, kind: input, shape index: {}]
  %s1 = inlined_call_operand.vmem [shape: f32[2,64], index: 1, kind: output, shape index: {}]
  %v2 = vld [vmem:[%s0] sm:$0x3]
  %3 = xla_tuple %v2
  %4 = xla_tuple %3
  %v5 = vxor.u32 %v2, 2147483648
  %6 = xla_tuple %v5
  %7 = vst [vmem:[%s1] sm:$0x3] %v5

// kernel: model_forward_train.3
$region0: #{model_forward_train.3}
  #allocation0 [shape = 'u32[]', space=smem, size = 0x4, offset = 0x4, fixed_abs, tag = 'smem constant byte address 0x4 - core index']
  #allocation1 [shape = 'u32[144,128]{1,0:T(1,128)}', space=vmem, size = 0x12000, scoped, tag = 'internal scratch']
  %s0 = inlined_call_operand.vmem [shape: f32[8,384], index: 0, kind: input, shape index: {}]
  %s1 = inlined_call_operand.vmem [shape: f32[1,1024], index: 1, kind: input, shape index: {}]
  %s2 = inlined_call_operand.vmem [shape: bf16[64,384], index: 2, kind: input, shape index: {}]
  %s3 = inlined_call_operand.vmem [shape: bf16[256,1152], index: 3, kind: input, shape index: {}]
  %s4 = inlined_call_operand.vmem [shape: bf16[128,256], index: 4, kind: input, shape index: {}]
  %s5 = inlined_call_operand.vmem [shape: f32[8,256], index: 5, kind: output, shape index: {}]
  %s6 = sld [smem:[#allocation0]]
  $region30: #{model_forward_train.3} parent=0
    _
  %s8 = ssub.s32 1, %s6
  %s9 = scalar_select 0, %s8, %s6
  // Predicated region
  $region2: #{model_forward_train.3} parent=0 // pred_check
    _
  $region3: #{model_forward_train.3} parent=0 // pred_check_branch
    %11 = sbr.rel (0) target = $region5
  $region4: #{model_forward_train.3} parent=0 // pred_region
    _
  $region5: #{model_forward_train.3} parent=0 // pred_fallthru
    _
  // Predicated region
  $region6: #{model_forward_train.3} parent=0 // pred_check
    _
  $region7: #{model_forward_train.3} parent=0 // pred_check_branch
    %13 = sbr.rel (0) target = $region9
  $region8: #{model_forward_train.3} parent=0 // pred_region
    _
  $region9: #{model_forward_train.3} parent=0 // pred_fallthru
    _
  // Predicated region
  $region10: #{model_forward_train.3} parent=0 // pred_check
    _
  $region11: #{model_forward_train.3} parent=0 // pred_check_branch
    %15 = sbr.rel (0) target = $region13
  $region12: #{model_forward_train.3} parent=0 // pred_region
    _
  $region13: #{model_forward_train.3} parent=0 // pred_fallthru
    _
  // Predicated region
  $region14: #{model_forward_train.3} parent=0 // pred_check
    _
  $region15: #{model_forward_train.3} parent=0 // pred_check_branch
    %17 = sbr.rel (0) target = $region17
  $region16: #{model_forward_train.3} parent=0 // pred_region
    _
  $region17: #{model_forward_train.3} parent=0 // pred_fallthru
    _
  // Predicated region
  $region18: #{model_forward_train.3} parent=0 // pred_check
    _
  $region19: #{model_forward_train.3} parent=0 // pred_check_branch
    %19 = sbr.rel (0) target = $region21
  $region20: #{model_forward_train.3} parent=0 // pred_region
    _
  $region21: #{model_forward_train.3} parent=0 // pred_fallthru
    _
  %v21 = vld [vmem:[%s0] sm:$0xff]
  %v22 = vld [vmem:[%s0 + $0x8] sm:$0xff]
  %v23 = vld [vmem:[%s0 + $0x10] sm:$0xff]
  %25 = vset.pattern.permute.xlu0 0
  %26 = vperm.xlu0 %25, %v23
  %v27 = vpop.permute.xlu0 %26
  %v29 = vmul.f32 %v27, %v21
  %30 = vset.pattern.permute.xlu0 1
  %31 = vperm.xlu0 %30, %v23
  %v32 = vpop.permute.xlu0 %31
  %v34 = vmul.f32 %v32, %v21
  %36 = vrot.lane.b32.xlu0 %v34, 64
  %v37 = vpop.permute.xlu0 %36
  %v39 = vadd.f32 %v29, %v37
  %v40 = vmul.f32 %v21, %v22
  %v41 = vsub.f32 1.0, %v22
  %v42 = vmul.f32 %v39, %v41
  %44 = vrot.lane.b32.xlu0 %v42, 64
  %v45 = vpop.permute.xlu0 %44
  %vm47 = vcmask 523264
  %v48 = vsel %vm47, %v40, %v45
  %v49 = vrcp.pop %v23
  %v50 = vmul.f32 %v32, %v22
  %52 = vrot.lane.b32.xlu0 %v50, 64
  %v53 = vpop.permute.xlu0 %52
  %v55 = vsub.f32 %v39, %v53
  %57 = vset.pattern.permute.xlu0 0
  %58 = vperm.xlu0 %57, %v49
  %v59 = vpop.permute.xlu0 %58
  %v61 = vmul.f32 %v55, %v59
  %v62 = vpack.c.bf16 %v61, %v61
  %v63 = vld [vmem:[%s2] sm:$0xff]
  %v64 = vld [vmem:[%s2 + $0xc] sm:$0xff]
  %v65 = vld [vmem:[%s2 + $0x18] sm:$0xff]
  %v66 = vld [vmem:[%s2 + $0x24] sm:$0xff]
  %v67 = vld [vmem:[%s2 + $0x30] sm:$0xff]
  %v68 = vld [vmem:[%s2 + $0x3c] sm:$0xff]
  %v69 = vld [vmem:[%s2 + $0x48] sm:$0xff]
  %v70 = vld [vmem:[%s2 + $0x54] sm:$0xff]
  %v71 = vld [vmem:[%s1] sm:$0x3]
  %v73 = vlaneseq
  %v74 = vshrl.u32 %v73, 7
  %v75 = vsub.s32 0, %v74
  %v76 = vrot.slane %v71, %v75
  %v77 = vlaneseq
  %v78 = vshrl.u32 %v77, 7
  %v79 = vsub.s32 1, %v78
  %v80 = vrot.slane %v71, %v79
  %v91 = vunpack.c.l.b16 %v63
  %v92 = vunpack.c.h.b16 %v63
  %v93 = vunpack.c.l.b16 %v64
  %v94 = vunpack.c.h.b16 %v64
  %v95 = vunpack.c.l.b16 %v65
  %v96 = vunpack.c.h.b16 %v65
  %v97 = vunpack.c.l.b16 %v66
  %v98 = vunpack.c.h.b16 %v66
  %v99 = vunpack.c.l.b16 %v67
  %v100 = vunpack.c.h.b16 %v67
  %v101 = vunpack.c.l.b16 %v68
  %v102 = vunpack.c.h.b16 %v68
  %v103 = vunpack.c.l.b16 %v69
  %v104 = vunpack.c.h.b16 %v69
  %v105 = vunpack.c.l.b16 %v70
  %v106 = vunpack.c.h.b16 %v70
  %v107 = vpack.c.b16 %v93, %v91
  %v108 = vpack.c.b16 %v94, %v92
  %v109 = vpack.c.b16 %v97, %v95
  %v110 = vpack.c.b16 %v98, %v96
  %v111 = vpack.c.b16 %v101, %v99
  %v112 = vpack.c.b16 %v102, %v100
  %v113 = vpack.c.b16 %v105, %v103
  %v114 = vpack.c.b16 %v106, %v104
  %v124 = vsel %vm47, %v62, 0
  %126 = vmatprep.subr.bf16.mxu0 %v108
  %127 = vmatpush1.bf16.msra.mxu0 %v107
  %128 = vmatprep.subr.bf16.mxu0 %v110
  %129 = vmatpush1.bf16.msra.mxu0 %v109
  %130 = vmatprep.subr.bf16.mxu0 %v112
  %131 = vmatpush1.bf16.msra.mxu0 %v111
  %132 = vmatprep.subr.bf16.mxu0 %v114
  %133 = vmatpush1.bf16.msra.mxu0 %v113
  %134 = vmatprep.subr.bf16.mxu0 0
  %135 = vmatpush1.bf16.msra.mxu0 0
  %136 = vmatprep.subr.bf16.mxu0 0
  %137 = vmatpush1.bf16.msra.mxu0 0
  %138 = vmatprep.subr.bf16.mxu0 0
  %139 = vmatpush1.bf16.msra.mxu0 0
  %140 = vmatprep.subr.bf16.mxu0 0
  %141 = vmatpush1.bf16.msra.mxu0 0
  %142 = vmatprep.subr.bf16.mxu0 0
  %143 = vmatpush1.bf16.msra.mxu0 0
  %144 = vmatprep.subr.bf16.mxu0 0
  %145 = vmatpush1.bf16.msra.mxu0 0
  %146 = vmatprep.subr.bf16.mxu0 0
  %147 = vmatpush1.bf16.msra.mxu0 0
  %148 = vmatprep.subr.bf16.mxu0 0
  %149 = vmatpush1.bf16.msra.mxu0 0
  %150 = vmatprep.subr.bf16.mxu0 0
  %151 = vmatpush1.bf16.msra.mxu0 0
  %152 = vmatprep.subr.bf16.mxu0 0
  %153 = vmatpush1.bf16.msra.mxu0 0
  %154 = vmatprep.subr.bf16.mxu0 0
  %155 = vmatpush1.bf16.msra.mxu0 0
  %156 = vmatprep.subr.bf16.mxu0 0
  %157 = vmatpush1.bf16.msra.mxu0 0
  %158 = vmatprep.mubr.bf16.mxu0 0
  %159 = vmatmul.mubr.bf16.gmra.mrb[0].mxu0 %v124
  %v160 = vpop.f32.mrb[0].mxu0
  %v161 = vadd.f32 %v76, %v160
  %v162 = vpop.f32.mrb[0].mxu0
  %v163 = vadd.f32 %v80, %v162
  %v164 = vpop.f32.mrb[0].mxu0
  %v165 = vpop.f32.mrb[0].mxu0
  %166 = vdwg.mxu0
  %vm167 = vcmp.gt.f32.partialorder %v161, 0.0
  %vm168 = vcmp.gt.f32.partialorder %v163, 0.0
  %v169 = vmul.f32 %v161, 0.2
  %v170 = vmul.f32 %v163, 0.2
  %v171 = vsel %vm167, %v161, %v169
  %v172 = vsel %vm168, %v163, %v170
  %v173 = vpack.c.bf16 %v171, %v171
  %v174 = vpack.c.bf16 %v172, %v172
  %v175 = vld [vmem:[%s3] sm:$0xff]
  %v176 = vld [vmem:[%s3 + $0x24] sm:$0xff]
  %v177 = vld [vmem:[%s3 + $0x48] sm:$0xff]
  %v178 = vld [vmem:[%s3 + $0x6c] sm:$0xff]
  %v179 = vld [vmem:[%s3 + $0x90] sm:$0xff]
  %v180 = vld [vmem:[%s3 + $0xb4] sm:$0xff]
  %v181 = vld [vmem:[%s3 + $0xd8] sm:$0xff]
  %v182 = vld [vmem:[%s3 + $0xfc] sm:$0xff]
  %v183 = vld [vmem:[%s3 + $0x120] sm:$0xff]
  %v184 = vld [vmem:[%s3 + $0x144] sm:$0xff]
  %v185 = vld [vmem:[%s3 + $0x168] sm:$0xff]
  %v186 = vld [vmem:[%s3 + $0x18c] sm:$0xff]
  %v187 = vld [vmem:[%s3 + $0x1b0] sm:$0xff]
  %v188 = vld [vmem:[%s3 + $0x1d4] sm:$0xff]
  %v189 = vld [vmem:[%s3 + $0x1f8] sm:$0xff]
  %v190 = vld [vmem:[%s3 + $0x21c] sm:$0xff]
  %v191 = vld [vmem:[%s3 + $0x240] sm:$0xff]
  %v192 = vld [vmem:[%s3 + $0x264] sm:$0xff]
  %v193 = vld [vmem:[%s3 + $0x288] sm:$0xff]
  %v194 = vld [vmem:[%s3 + $0x2ac] sm:$0xff]
  %v195 = vld [vmem:[%s3 + $0x2d0] sm:$0xff]
  %v196 = vld [vmem:[%s3 + $0x2f4] sm:$0xff]
  %v197 = vld [vmem:[%s3 + $0x318] sm:$0xff]
  %v198 = vld [vmem:[%s3 + $0x33c] sm:$0xff]
  %v199 = vld [vmem:[%s3 + $0x360] sm:$0xff]
  %v200 = vld [vmem:[%s3 + $0x384] sm:$0xff]
  %v201 = vld [vmem:[%s3 + $0x3a8] sm:$0xff]
  %v202 = vld [vmem:[%s3 + $0x3cc] sm:$0xff]
  %v203 = vld [vmem:[%s3 + $0x3f0] sm:$0xff]
  %v204 = vld [vmem:[%s3 + $0x414] sm:$0xff]
  %v205 = vld [vmem:[%s3 + $0x438] sm:$0xff]
  %v206 = vld [vmem:[%s3 + $0x45c] sm:$0xff]
  %v207 = vld [vmem:[%s1 + $0x2] sm:$0x3]
  %v209 = vlaneseq
  %v210 = vshrl.u32 %v209, 7
  %v211 = vsub.s32 0, %v210
  %v212 = vrot.slane %v207, %v211
  %v213 = vlaneseq
  %v214 = vshrl.u32 %v213, 7
  %v215 = vsub.s32 1, %v214
  %v216 = vrot.slane %v207, %v215
  %v251 = vunpack.c.l.b16 %v175
  %v252 = vunpack.c.h.b16 %v175
  %v253 = vunpack.c.l.b16 %v176
  %v254 = vunpack.c.h.b16 %v176
  %v255 = vunpack.c.l.b16 %v177
  %v256 = vunpack.c.h.b16 %v177
  %v257 = vunpack.c.l.b16 %v178
  %v258 = vunpack.c.h.b16 %v178
  %v259 = vunpack.c.l.b16 %v179
  %v260 = vunpack.c.h.b16 %v179
  %v261 = vunpack.c.l.b16 %v180
  %v262 = vunpack.c.h.b16 %v180
  %v263 = vunpack.c.l.b16 %v181
  %v264 = vunpack.c.h.b16 %v181
  %v265 = vunpack.c.l.b16 %v182
  %v266 = vunpack.c.h.b16 %v182
  %v267 = vunpack.c.l.b16 %v183
  %v268 = vunpack.c.h.b16 %v183
  %v269 = vunpack.c.l.b16 %v184
  %v270 = vunpack.c.h.b16 %v184
  %v271 = vunpack.c.l.b16 %v185
  %v272 = vunpack.c.h.b16 %v185
  %v273 = vunpack.c.l.b16 %v186
  %v274 = vunpack.c.h.b16 %v186
  %v275 = vunpack.c.l.b16 %v187
  %v276 = vunpack.c.h.b16 %v187
  %v277 = vunpack.c.l.b16 %v188
  %v278 = vunpack.c.h.b16 %v188
  %v279 = vunpack.c.l.b16 %v189
  %v280 = vunpack.c.h.b16 %v189
  %v281 = vunpack.c.l.b16 %v190
  %v282 = vunpack.c.h.b16 %v190
  %v283 = vunpack.c.l.b16 %v191
  %v284 = vunpack.c.h.b16 %v191
  %v285 = vunpack.c.l.b16 %v192
  %v286 = vunpack.c.h.b16 %v192
  %v287 = vunpack.c.l.b16 %v193
  %v288 = vunpack.c.h.b16 %v193
  %v289 = vunpack.c.l.b16 %v194
  %v290 = vunpack.c.h.b16 %v194
  %v291 = vunpack.c.l.b16 %v195
  %v292 = vunpack.c.h.b16 %v195
  %v293 = vunpack.c.l.b16 %v196
  %v294 = vunpack.c.h.b16 %v196
  %v295 = vunpack.c.l.b16 %v197
  %v296 = vunpack.c.h.b16 %v197
  %v297 = vunpack.c.l.b16 %v198
  %v298 = vunpack.c.h.b16 %v198
  %v299 = vunpack.c.l.b16 %v199
  %v300 = vunpack.c.h.b16 %v199
  %v301 = vunpack.c.l.b16 %v200
  %v302 = vunpack.c.h.b16 %v200
  %v303 = vunpack.c.l.b16 %v201
  %v304 = vunpack.c.h.b16 %v201
  %v305 = vunpack.c.l.b16 %v202
  %v306 = vunpack.c.h.b16 %v202
  %v307 = vunpack.c.l.b16 %v203
  %v308 = vunpack.c.h.b16 %v203
  %v309 = vunpack.c.l.b16 %v204
  %v310 = vunpack.c.h.b16 %v204
  %v311 = vunpack.c.l.b16 %v205
  %v312 = vunpack.c.h.b16 %v205
  %v313 = vunpack.c.l.b16 %v206
  %v314 = vunpack.c.h.b16 %v206
  %v315 = vpack.c.b16 %v253, %v251
  %v316 = vpack.c.b16 %v254, %v252
  %v317 = vpack.c.b16 %v257, %v255
  %v318 = vpack.c.b16 %v258, %v256
  %v319 = vpack.c.b16 %v261, %v259
  %v320 = vpack.c.b16 %v262, %v260
  %v321 = vpack.c.b16 %v265, %v263
  %v322 = vpack.c.b16 %v266, %v264
  %v323 = vpack.c.b16 %v269, %v267
  %v324 = vpack.c.b16 %v270, %v268
  %v325 = vpack.c.b16 %v273, %v271
  %v326 = vpack.c.b16 %v274, %v272
  %v327 = vpack.c.b16 %v277, %v275
  %v328 = vpack.c.b16 %v278, %v276
  %v329 = vpack.c.b16 %v281, %v279
  %v330 = vpack.c.b16 %v282, %v280
  %v331 = vpack.c.b16 %v285, %v283
  %v332 = vpack.c.b16 %v286, %v284
  %v333 = vpack.c.b16 %v289, %v287
  %v334 = vpack.c.b16 %v290, %v288
  %v335 = vpack.c.b16 %v293, %v291
  %v336 = vpack.c.b16 %v294, %v292
  %v337 = vpack.c.b16 %v297, %v295
  %v338 = vpack.c.b16 %v298, %v296
  %v339 = vpack.c.b16 %v301, %v299
  %v340 = vpack.c.b16 %v302, %v300
  %v341 = vpack.c.b16 %v305, %v303
  %v342 = vpack.c.b16 %v306, %v304
  %v343 = vpack.c.b16 %v309, %v307
  %v344 = vpack.c.b16 %v310, %v308
  %v345 = vpack.c.b16 %v313, %v311
  %v346 = vpack.c.b16 %v314, %v312
  %379 = vmatprep.subr.bf16.mxu0 %v316
  %380 = vmatpush1.bf16.msra.mxu0 %v315
  %381 = vmatprep.subr.bf16.mxu0 %v318
  %382 = vmatpush1.bf16.msra.mxu0 %v317
  %383 = vmatprep.subr.bf16.mxu0 %v320
  %384 = vmatpush1.bf16.msra.mxu0 %v319
  %385 = vmatprep.subr.bf16.mxu0 %v322
  %386 = vmatpush1.bf16.msra.mxu0 %v321
  %387 = vmatprep.subr.bf16.mxu0 %v324
  %388 = vmatpush1.bf16.msra.mxu0 %v323
  %389 = vmatprep.subr.bf16.mxu0 %v326
  %390 = vmatpush1.bf16.msra.mxu0 %v325
  %391 = vmatprep.subr.bf16.mxu0 %v328
  %392 = vmatpush1.bf16.msra.mxu0 %v327
  %393 = vmatprep.subr.bf16.mxu0 %v330
  %394 = vmatpush1.bf16.msra.mxu0 %v329
  %395 = vmatprep.subr.bf16.mxu0 %v332
  %396 = vmatpush1.bf16.msra.mxu0 %v331
  %397 = vmatprep.subr.bf16.mxu0 %v334
  %398 = vmatpush1.bf16.msra.mxu0 %v333
  %399 = vmatprep.subr.bf16.mxu0 %v336
  %400 = vmatpush1.bf16.msra.mxu0 %v335
  %401 = vmatprep.subr.bf16.mxu0 %v338
  %402 = vmatpush1.bf16.msra.mxu0 %v337
  %403 = vmatprep.subr.bf16.mxu0 %v340
  %404 = vmatpush1.bf16.msra.mxu0 %v339
  %405 = vmatprep.subr.bf16.mxu0 %v342
  %406 = vmatpush1.bf16.msra.mxu0 %v341
  %407 = vmatprep.subr.bf16.mxu0 %v344
  %408 = vmatpush1.bf16.msra.mxu0 %v343
  %409 = vmatprep.subr.bf16.mxu0 %v346
  %410 = vmatpush1.bf16.msra.mxu0 %v345
  %411 = vmatprep.mubr.bf16.mxu0 %v174
  %412 = vmatmul.mubr.bf16.gmra.mrb[0].mxu0 %v173
  %v413 = vpop.f32.mrb[0].mxu0
  %v414 = vadd.f32 %v212, %v413
  %v415 = vpop.f32.mrb[0].mxu0
  %v416 = vadd.f32 %v216, %v415
  %v417 = vpop.f32.mrb[0].mxu0
  %v418 = vpop.f32.mrb[0].mxu0
  %419 = vdwg.mxu0
  %v420 = vld [vmem:[%s3 + $0x10] sm:$0xff]
  %v421 = vld [vmem:[%s3 + $0x34] sm:$0xff]
  %v422 = vld [vmem:[%s3 + $0x58] sm:$0xff]
  %v423 = vld [vmem:[%s3 + $0x7c] sm:$0xff]
  %v424 = vld [vmem:[%s3 + $0xa0] sm:$0xff]
  %v425 = vld [vmem:[%s3 + $0xc4] sm:$0xff]
  %v426 = vld [vmem:[%s3 + $0xe8] sm:$0xff]
  %v427 = vld [vmem:[%s3 + $0x10c] sm:$0xff]
  %v428 = vld [vmem:[%s3 + $0x130] sm:$0xff]
  %v429 = vld [vmem:[%s3 + $0x154] sm:$0xff]
  %v430 = vld [vmem:[%s3 + $0x178] sm:$0xff]
  %v431 = vld [vmem:[%s3 + $0x19c] sm:$0xff]
  %v432 = vld [vmem:[%s3 + $0x1c0] sm:$0xff]
  %v433 = vld [vmem:[%s3 + $0x1e4] sm:$0xff]
  %v434 = vld [vmem:[%s3 + $0x208] sm:$0xff]
  %v435 = vld [vmem:[%s3 + $0x22c] sm:$0xff]
  %v436 = vld [vmem:[%s3 + $0x250] sm:$0xff]
  %v437 = vld [vmem:[%s3 + $0x274] sm:$0xff]
  %v438 = vld [vmem:[%s3 + $0x298] sm:$0xff]
  %v439 = vld [vmem:[%s3 + $0x2bc] sm:$0xff]
  %v440 = vld [vmem:[%s3 + $0x2e0] sm:$0xff]
  %v441 = vld [vmem:[%s3 + $0x304] sm:$0xff]
  %v442 = vld [vmem:[%s3 + $0x328] sm:$0xff]
  %v443 = vld [vmem:[%s3 + $0x34c] sm:$0xff]
  %v444 = vld [vmem:[%s3 + $0x370] sm:$0xff]
  %v445 = vld [vmem:[%s3 + $0x394] sm:$0xff]
  %v446 = vld [vmem:[%s3 + $0x3b8] sm:$0xff]
  %v447 = vld [vmem:[%s3 + $0x3dc] sm:$0xff]
  %v448 = vld [vmem:[%s3 + $0x400] sm:$0xff]
  %v449 = vld [vmem:[%s3 + $0x424] sm:$0xff]
  %v450 = vld [vmem:[%s3 + $0x448] sm:$0xff]
  %v451 = vld [vmem:[%s3 + $0x46c] sm:$0xff]
  %v452 = vpack.c.bf16 %v414, %v414
  %v453 = vpack.c.bf16 %v416, %v416
  %v486 = vunpack.c.l.b16 %v420
  %v487 = vunpack.c.h.b16 %v420
  %v488 = vunpack.c.l.b16 %v421
  %v489 = vunpack.c.h.b16 %v421
  %v490 = vunpack.c.l.b16 %v422
  %v491 = vunpack.c.h.b16 %v422
  %v492 = vunpack.c.l.b16 %v423
  %v493 = vunpack.c.h.b16 %v423
  %v494 = vunpack.c.l.b16 %v424
  %v495 = vunpack.c.h.b16 %v424
  %v496 = vunpack.c.l.b16 %v425
  %v497 = vunpack.c.h.b16 %v425
  %v498 = vunpack.c.l.b16 %v426
  %v499 = vunpack.c.h.b16 %v426
  %v500 = vunpack.c.l.b16 %v427
  %v501 = vunpack.c.h.b16 %v427
  %v502 = vunpack.c.l.b16 %v428
  %v503 = vunpack.c.h.b16 %v428
  %v504 = vunpack.c.l.b16 %v429
  %v505 = vunpack.c.h.b16 %v429
  %v506 = vunpack.c.l.b16 %v430
  %v507 = vunpack.c.h.b16 %v430
  %v508 = vunpack.c.l.b16 %v431
  %v509 = vunpack.c.h.b16 %v431
  %v510 = vunpack.c.l.b16 %v432
  %v511 = vunpack.c.h.b16 %v432
  %v512 = vunpack.c.l.b16 %v433
  %v513 = vunpack.c.h.b16 %v433
  %v514 = vunpack.c.l.b16 %v434
  %v515 = vunpack.c.h.b16 %v434
  %v516 = vunpack.c.l.b16 %v435
  %v517 = vunpack.c.h.b16 %v435
  %v518 = vunpack.c.l.b16 %v436
  %v519 = vunpack.c.h.b16 %v436
  %v520 = vunpack.c.l.b16 %v437
  %v521 = vunpack.c.h.b16 %v437
  %v522 = vunpack.c.l.b16 %v438
  %v523 = vunpack.c.h.b16 %v438
  %v524 = vunpack.c.l.b16 %v439
  %v525 = vunpack.c.h.b16 %v439
  %v526 = vunpack.c.l.b16 %v440
  %v527 = vunpack.c.h.b16 %v440
  %v528 = vunpack.c.l.b16 %v441
  %v529 = vunpack.c.h.b16 %v441
  %v530 = vunpack.c.l.b16 %v442
  %v531 = vunpack.c.h.b16 %v442
  %v532 = vunpack.c.l.b16 %v443
  %v533 = vunpack.c.h.b16 %v443
  %v534 = vunpack.c.l.b16 %v444
  %v535 = vunpack.c.h.b16 %v444
  %v536 = vunpack.c.l.b16 %v445
  %v537 = vunpack.c.h.b16 %v445
  %v538 = vunpack.c.l.b16 %v446
  %v539 = vunpack.c.h.b16 %v446
  %v540 = vunpack.c.l.b16 %v447
  %v541 = vunpack.c.h.b16 %v447
  %v542 = vunpack.c.l.b16 %v448
  %v543 = vunpack.c.h.b16 %v448
  %v544 = vunpack.c.l.b16 %v449
  %v545 = vunpack.c.h.b16 %v449
  %v546 = vunpack.c.l.b16 %v450
  %v547 = vunpack.c.h.b16 %v450
  %v548 = vunpack.c.l.b16 %v451
  %v549 = vunpack.c.h.b16 %v451
  %v550 = vpack.c.b16 %v488, %v486
  %v551 = vpack.c.b16 %v489, %v487
  %v552 = vpack.c.b16 %v492, %v490
  %v553 = vpack.c.b16 %v493, %v491
  %v554 = vpack.c.b16 %v496, %v494
  %v555 = vpack.c.b16 %v497, %v495
  %v556 = vpack.c.b16 %v500, %v498
  %v557 = vpack.c.b16 %v501, %v499
  %v558 = vpack.c.b16 %v504, %v502
  %v559 = vpack.c.b16 %v505, %v503
  %v560 = vpack.c.b16 %v508, %v506
  %v561 = vpack.c.b16 %v509, %v507
  %v562 = vpack.c.b16 %v512, %v510
  %v563 = vpack.c.b16 %v513, %v511
  %v564 = vpack.c.b16 %v516, %v514
  %v565 = vpack.c.b16 %v517, %v515
  %v566 = vpack.c.b16 %v520, %v518
  %v567 = vpack.c.b16 %v521, %v519
  %v568 = vpack.c.b16 %v524, %v522
  %v569 = vpack.c.b16 %v525, %v523
  %v570 = vpack.c.b16 %v528, %v526
  %v571 = vpack.c.b16 %v529, %v527
  %v572 = vpack.c.b16 %v532, %v530
  %v573 = vpack.c.b16 %v533, %v531
  %v574 = vpack.c.b16 %v536, %v534
  %v575 = vpack.c.b16 %v537, %v535
  %v576 = vpack.c.b16 %v540, %v538
  %v577 = vpack.c.b16 %v541, %v539
  %v578 = vpack.c.b16 %v544, %v542
  %v579 = vpack.c.b16 %v545, %v543
  %v580 = vpack.c.b16 %v548, %v546
  %v581 = vpack.c.b16 %v549, %v547
  %614 = vmatprep.subr.bf16.mxu0 %v551
  %615 = vmatpush1.bf16.msra.mxu0 %v550
  %616 = vmatprep.subr.bf16.mxu0 %v553
  %617 = vmatpush1.bf16.msra.mxu0 %v552
  %618 = vmatprep.subr.bf16.mxu0 %v555
  %619 = vmatpush1.bf16.msra.mxu0 %v554
  %620 = vmatprep.subr.bf16.mxu0 %v557
  %621 = vmatpush1.bf16.msra.mxu0 %v556
  %622 = vmatprep.subr.bf16.mxu0 %v559
  %623 = vmatpush1.bf16.msra.mxu0 %v558
  %624 = vmatprep.subr.bf16.mxu0 %v561
  %625 = vmatpush1.bf16.msra.mxu0 %v560
  %626 = vmatprep.subr.bf16.mxu0 %v563
  %627 = vmatpush1.bf16.msra.mxu0 %v562
  %628 = vmatprep.subr.bf16.mxu0 %v565
  %629 = vmatpush1.bf16.msra.mxu0 %v564
  %630 = vmatprep.subr.bf16.mxu0 %v567
  %631 = vmatpush1.bf16.msra.mxu0 %v566
  %632 = vmatprep.subr.bf16.mxu0 %v569
  %633 = vmatpush1.bf16.msra.mxu0 %v568
  %634 = vmatprep.subr.bf16.mxu0 %v571
  %635 = vmatpush1.bf16.msra.mxu0 %v570
  %636 = vmatprep.subr.bf16.mxu0 %v573
  %637 = vmatpush1.bf16.msra.mxu0 %v572
  %638 = vmatprep.subr.bf16.mxu0 %v575
  %639 = vmatpush1.bf16.msra.mxu0 %v574
  %640 = vmatprep.subr.bf16.mxu0 %v577
  %641 = vmatpush1.bf16.msra.mxu0 %v576
  %642 = vmatprep.subr.bf16.mxu0 %v579
  %643 = vmatpush1.bf16.msra.mxu0 %v578
  %644 = vmatprep.subr.bf16.mxu0 %v581
  %645 = vmatpush1.bf16.msra.mxu0 %v580
  %646 = vmatprep.mubr.bf16.mxu0 %v453
  %647 = vmatmul.mubr.bf16.gmra.mrb[0].mxu0 %v452
  %v648 = vpop.f32.mrb[0].mxu0
  %v649 = vadd.f32 0.0, %v648
  %v650 = vpop.f32.mrb[0].mxu0
  %v651 = vadd.f32 0.0, %v650
  %v652 = vpop.f32.mrb[0].mxu0
  %v653 = vpop.f32.mrb[0].mxu0
  %654 = vdwg.mxu0
  %v655 = vsub.f32 %v414, %v649
  %v656 = vsub.f32 %v416, %v651
  %v657 = vmul.f32 %v655, %v655
  %v658 = vmul.f32 %v656, %v656
  %v659 = vpack.c.bf16 %v657, %v657
  %v660 = vpack.c.bf16 %v658, %v658
  %661 = vmatprep.subr.bf16.mxu0 %v551
  %662 = vmatpush1.bf16.msra.mxu0 %v550
  %663 = vmatprep.subr.bf16.mxu0 %v553
  %664 = vmatpush1.bf16.msra.mxu0 %v552
  %665 = vmatprep.subr.bf16.mxu0 %v555
  %666 = vmatpush1.bf16.msra.mxu0 %v554
  %667 = vmatprep.subr.bf16.mxu0 %v557
  %668 = vmatpush1.bf16.msra.mxu0 %v556
  %669 = vmatprep.subr.bf16.mxu0 %v559
  %670 = vmatpush1.bf16.msra.mxu0 %v558
  %671 = vmatprep.subr.bf16.mxu0 %v561
  %672 = vmatpush1.bf16.msra.mxu0 %v560
  %673 = vmatprep.subr.bf16.mxu0 %v563
  %674 = vmatpush1.bf16.msra.mxu0 %v562
  %675 = vmatprep.subr.bf16.mxu0 %v565
  %676 = vmatpush1.bf16.msra.mxu0 %v564
  %677 = vmatprep.subr.bf16.mxu0 %v567
  %678 = vmatpush1.bf16.msra.mxu0 %v566
  %679 = vmatprep.subr.bf16.mxu0 %v569
  %680 = vmatpush1.bf16.msra.mxu0 %v568
  %681 = vmatprep.subr.bf16.mxu0 %v571
  %682 = vmatpush1.bf16.msra.mxu0 %v570
  %683 = vmatprep.subr.bf16.mxu0 %v573
  %684 = vmatpush1.bf16.msra.mxu0 %v572
  %685 = vmatprep.subr.bf16.mxu0 %v575
  %686 = vmatpush1.bf16.msra.mxu0 %v574
  %687 = vmatprep.subr.bf16.mxu0 %v577
  %688 = vmatpush1.bf16.msra.mxu0 %v576
  %689 = vmatprep.subr.bf16.mxu0 %v579
  %690 = vmatpush1.bf16.msra.mxu0 %v578
  %691 = vmatprep.subr.bf16.mxu0 %v581
  %692 = vmatpush1.bf16.msra.mxu0 %v580
  %693 = vmatprep.mubr.bf16.mxu0 %v660
  %694 = vmatmul.mubr.bf16.gmra.mrb[0].mxu0 %v659
  %v695 = vpop.f32.mrb[0].mxu0
  %v696 = vadd.f32 0.0, %v695
  %v697 = vpop.f32.mrb[0].mxu0
  %v698 = vadd.f32 0.0, %v697
  %v699 = vpop.f32.mrb[0].mxu0
  %v700 = vpop.f32.mrb[0].mxu0
  %701 = vdwg.mxu0
  %v702 = vmax.f32 %v696, 0.0
  %v703 = vmax.f32 %v698, 0.0
  %v704 = vadd.f32 %v702, 1e-05
  %v705 = vadd.f32 %v703, 1e-05
  %v706 = vrsqrt.pop %v704
  %v707 = vrsqrt.pop %v705
  %v708 = vmul.f32 %v655, %v706
  %v709 = vmul.f32 %v656, %v707
  %vm710 = vcmp.gt.f32.partialorder %v708, 0.0
  %vm711 = vcmp.gt.f32.partialorder %v709, 0.0
  %v712 = vmul.f32 %v708, 0.2
  %v713 = vmul.f32 %v709, 0.2
  %v714 = vsel %vm710, %v708, %v712
  %v715 = vsel %vm711, %v709, %v713
  %v716 = vpack.c.bf16 %v714, %v714
  %v717 = vpack.c.bf16 %v715, %v715
  %v718 = vld [vmem:[%s3 + $0x8] sm:$0xff]
  %v719 = vld [vmem:[%s3 + $0x2c] sm:$0xff]
  %v720 = vld [vmem:[%s3 + $0x50] sm:$0xff]
  %v721 = vld [vmem:[%s3 + $0x74] sm:$0xff]
  %v722 = vld [vmem:[%s3 + $0x98] sm:$0xff]
  %v723 = vld [vmem:[%s3 + $0xbc] sm:$0xff]
  %v724 = vld [vmem:[%s3 + $0xe0] sm:$0xff]
  %v725 = vld [vmem:[%s3 + $0x104] sm:$0xff]
  %v726 = vld [vmem:[%s3 + $0x128] sm:$0xff]
  %v727 = vld [vmem:[%s3 + $0x14c] sm:$0xff]
  %v728 = vld [vmem:[%s3 + $0x170] sm:$0xff]
  %v729 = vld [vmem:[%s3 + $0x194] sm:$0xff]
  %v730 = vld [vmem:[%s3 + $0x1b8] sm:$0xff]
  %v731 = vld [vmem:[%s3 + $0x1dc] sm:$0xff]
  %v732 = vld [vmem:[%s3 + $0x200] sm:$0xff]
  %v733 = vld [vmem:[%s3 + $0x224] sm:$0xff]
  %v734 = vld [vmem:[%s3 + $0x248] sm:$0xff]
  %v735 = vld [vmem:[%s3 + $0x26c] sm:$0xff]
  %v736 = vld [vmem:[%s3 + $0x290] sm:$0xff]
  %v737 = vld [vmem:[%s3 + $0x2b4] sm:$0xff]
  %v738 = vld [vmem:[%s3 + $0x2d8] sm:$0xff]
  %v739 = vld [vmem:[%s3 + $0x2fc] sm:$0xff]
  %v740 = vld [vmem:[%s3 + $0x320] sm:$0xff]
  %v741 = vld [vmem:[%s3 + $0x344] sm:$0xff]
  %v742 = vld [vmem:[%s3 + $0x368] sm:$0xff]
  %v743 = vld [vmem:[%s3 + $0x38c] sm:$0xff]
  %v744 = vld [vmem:[%s3 + $0x3b0] sm:$0xff]
  %v745 = vld [vmem:[%s3 + $0x3d4] sm:$0xff]
  %v746 = vld [vmem:[%s3 + $0x3f8] sm:$0xff]
  %v747 = vld [vmem:[%s3 + $0x41c] sm:$0xff]
  %v748 = vld [vmem:[%s3 + $0x440] sm:$0xff]
  %v749 = vld [vmem:[%s3 + $0x464] sm:$0xff]
  %v750 = vld [vmem:[%s1 + $0x4] sm:$0x3]
  %v752 = vlaneseq
  %v753 = vshrl.u32 %v752, 7
  %v754 = vsub.s32 0, %v753
  %v755 = vrot.slane %v750, %v754
  %v756 = vlaneseq
  %v757 = vshrl.u32 %v756, 7
  %v758 = vsub.s32 1, %v757
  %v759 = vrot.slane %v750, %v758
  %v794 = vunpack.c.l.b16 %v718
  %v795 = vunpack.c.h.b16 %v718
  %v796 = vunpack.c.l.b16 %v719
  %v797 = vunpack.c.h.b16 %v719
  %v798 = vunpack.c.l.b16 %v720
  %v799 = vunpack.c.h.b16 %v720
  %v800 = vunpack.c.l.b16 %v721
  %v801 = vunpack.c.h.b16 %v721
  %v802 = vunpack.c.l.b16 %v722
  %v803 = vunpack.c.h.b16 %v722
  %v804 = vunpack.c.l.b16 %v723
  %v805 = vunpack.c.h.b16 %v723
  %v806 = vunpack.c.l.b16 %v724
  %v807 = vunpack.c.h.b16 %v724
  %v808 = vunpack.c.l.b16 %v725
  %v809 = vunpack.c.h.b16 %v725
  %v810 = vunpack.c.l.b16 %v726
  %v811 = vunpack.c.h.b16 %v726
  %v812 = vunpack.c.l.b16 %v727
  %v813 = vunpack.c.h.b16 %v727
  %v814 = vunpack.c.l.b16 %v728
  %v815 = vunpack.c.h.b16 %v728
  %v816 = vunpack.c.l.b16 %v729
  %v817 = vunpack.c.h.b16 %v729
  %v818 = vunpack.c.l.b16 %v730
  %v819 = vunpack.c.h.b16 %v730
  %v820 = vunpack.c.l.b16 %v731
  %v821 = vunpack.c.h.b16 %v731
  %v822 = vunpack.c.l.b16 %v732
  %v823 = vunpack.c.h.b16 %v732
  %v824 = vunpack.c.l.b16 %v733
  %v825 = vunpack.c.h.b16 %v733
  %v826 = vunpack.c.l.b16 %v734
  %v827 = vunpack.c.h.b16 %v734
  %v828 = vunpack.c.l.b16 %v735
  %v829 = vunpack.c.h.b16 %v735
  %v830 = vunpack.c.l.b16 %v736
  %v831 = vunpack.c.h.b16 %v736
  %v832 = vunpack.c.l.b16 %v737
  %v833 = vunpack.c.h.b16 %v737
  %v834 = vunpack.c.l.b16 %v738
  %v835 = vunpack.c.h.b16 %v738
  %v836 = vunpack.c.l.b16 %v739
  %v837 = vunpack.c.h.b16 %v739
  %v838 = vunpack.c.l.b16 %v740
  %v839 = vunpack.c.h.b16 %v740
  %v840 = vunpack.c.l.b16 %v741
  %v841 = vunpack.c.h.b16 %v741
  %v842 = vunpack.c.l.b16 %v742
  %v843 = vunpack.c.h.b16 %v742
  %v844 = vunpack.c.l.b16 %v743
  %v845 = vunpack.c.h.b16 %v743
  %v846 = vunpack.c.l.b16 %v744
  %v847 = vunpack.c.h.b16 %v744
  %v848 = vunpack.c.l.b16 %v745
  %v849 = vunpack.c.h.b16 %v745
  %v850 = vunpack.c.l.b16 %v746
  %v851 = vunpack.c.h.b16 %v746
  %v852 = vunpack.c.l.b16 %v747
  %v853 = vunpack.c.h.b16 %v747
  %v854 = vunpack.c.l.b16 %v748
  %v855 = vunpack.c.h.b16 %v748
  %v856 = vunpack.c.l.b16 %v749
  %v857 = vunpack.c.h.b16 %v749
  %v858 = vpack.c.b16 %v796, %v794
  %v859 = vpack.c.b16 %v797, %v795
  %v860 = vpack.c.b16 %v800, %v798
  %v861 = vpack.c.b16 %v801, %v799
  %v862 = vpack.c.b16 %v804, %v802
  %v863 = vpack.c.b16 %v805, %v803
  %v864 = vpack.c.b16 %v808, %v806
  %v865 = vpack.c.b16 %v809, %v807
  %v866 = vpack.c.b16 %v812, %v810
  %v867 = vpack.c.b16 %v813, %v811
  %v868 = vpack.c.b16 %v816, %v814
  %v869 = vpack.c.b16 %v817, %v815
  %v870 = vpack.c.b16 %v820, %v818
  %v871 = vpack.c.b16 %v821, %v819
  %v872 = vpack.c.b16 %v824, %v822
  %v873 = vpack.c.b16 %v825, %v823
  %v874 = vpack.c.b16 %v828, %v826
  %v875 = vpack.c.b16 %v829, %v827
  %v876 = vpack.c.b16 %v832, %v830
  %v877 = vpack.c.b16 %v833, %v831
  %v878 = vpack.c.b16 %v836, %v834
  %v879 = vpack.c.b16 %v837, %v835
  %v880 = vpack.c.b16 %v840, %v838
  %v881 = vpack.c.b16 %v841, %v839
  %v882 = vpack.c.b16 %v844, %v842
  %v883 = vpack.c.b16 %v845, %v843
  %v884 = vpack.c.b16 %v848, %v846
  %v885 = vpack.c.b16 %v849, %v847
  %v886 = vpack.c.b16 %v852, %v850
  %v887 = vpack.c.b16 %v853, %v851
  %v888 = vpack.c.b16 %v856, %v854
  %v889 = vpack.c.b16 %v857, %v855
  %922 = vmatprep.subr.bf16.mxu0 %v859
  %923 = vmatpush1.bf16.msra.mxu0 %v858
  %924 = vmatprep.subr.bf16.mxu0 %v861
  %925 = vmatpush1.bf16.msra.mxu0 %v860
  %926 = vmatprep.subr.bf16.mxu0 %v863
  %927 = vmatpush1.bf16.msra.mxu0 %v862
  %928 = vmatprep.subr.bf16.mxu0 %v865
  %929 = vmatpush1.bf16.msra.mxu0 %v864
  %930 = vmatprep.subr.bf16.mxu0 %v867
  %931 = vmatpush1.bf16.msra.mxu0 %v866
  %932 = vmatprep.subr.bf16.mxu0 %v869
  %933 = vmatpush1.bf16.msra.mxu0 %v868
  %934 = vmatprep.subr.bf16.mxu0 %v871
  %935 = vmatpush1.bf16.msra.mxu0 %v870
  %936 = vmatprep.subr.bf16.mxu0 %v873
  %937 = vmatpush1.bf16.msra.mxu0 %v872
  %938 = vmatprep.subr.bf16.mxu0 %v875
  %939 = vmatpush1.bf16.msra.mxu0 %v874
  %940 = vmatprep.subr.bf16.mxu0 %v877
  %941 = vmatpush1.bf16.msra.mxu0 %v876
  %942 = vmatprep.subr.bf16.mxu0 %v879
  %943 = vmatpush1.bf16.msra.mxu0 %v878
  %944 = vmatprep.subr.bf16.mxu0 %v881
  %945 = vmatpush1.bf16.msra.mxu0 %v880
  %946 = vmatprep.subr.bf16.mxu0 %v883
  %947 = vmatpush1.bf16.msra.mxu0 %v882
  %948 = vmatprep.subr.bf16.mxu0 %v885
  %949 = vmatpush1.bf16.msra.mxu0 %v884
  %950 = vmatprep.subr.bf16.mxu0 %v887
  %951 = vmatpush1.bf16.msra.mxu0 %v886
  %952 = vmatprep.subr.bf16.mxu0 %v889
  %953 = vmatpush1.bf16.msra.mxu0 %v888
  %954 = vmatprep.mubr.bf16.mxu0 %v717
  %955 = vmatmul.mubr.bf16.gmra.mrb[0].mxu0 %v716
  %v956 = vpop.f32.mrb[0].mxu0
  %v957 = vadd.f32 %v755, %v956
  %v958 = vpop.f32.mrb[0].mxu0
  %v959 = vadd.f32 %v759, %v958
  %v960 = vpop.f32.mrb[0].mxu0
  %v961 = vpop.f32.mrb[0].mxu0
  %962 = vdwg.mxu0
  %v963 = vld [vmem:[%s3 + $0x18] sm:$0xff]
  %v964 = vld [vmem:[%s3 + $0x3c] sm:$0xff]
  %v965 = vld [vmem:[%s3 + $0x60] sm:$0xff]
  %v966 = vld [vmem:[%s3 + $0x84] sm:$0xff]
  %v967 = vld [vmem:[%s3 + $0xa8] sm:$0xff]
  %v968 = vld [vmem:[%s3 + $0xcc] sm:$0xff]
  %v969 = vld [vmem:[%s3 + $0xf0] sm:$0xff]
  %v970 = vld [vmem:[%s3 + $0x114] sm:$0xff]
  %v971 = vld [vmem:[%s3 + $0x138] sm:$0xff]
  %v972 = vld [vmem:[%s3 + $0x15c] sm:$0xff]
  %v973 = vld [vmem:[%s3 + $0x180] sm:$0xff]
  %v974 = vld [vmem:[%s3 + $0x1a4] sm:$0xff]
  %v975 = vld [vmem:[%s3 + $0x1c8] sm:$0xff]
  %v976 = vld [vmem:[%s3 + $0x1ec] sm:$0xff]
  %v977 = vld [vmem:[%s3 + $0x210] sm:$0xff]
  %v978 = vld [vmem:[%s3 + $0x234] sm:$0xff]
  %v979 = vld [vmem:[%s3 + $0x258] sm:$0xff]
  %v980 = vld [vmem:[%s3 + $0x27c] sm:$0xff]
  %v981 = vld [vmem:[%s3 + $0x2a0] sm:$0xff]
  %v982 = vld [vmem:[%s3 + $0x2c4] sm:$0xff]
  %v983 = vld [vmem:[%s3 + $0x2e8] sm:$0xff]
  %v984 = vld [vmem:[%s3 + $0x30c] sm:$0xff]
  %v985 = vld [vmem:[%s3 + $0x330] sm:$0xff]
  %v986 = vld [vmem:[%s3 + $0x354] sm:$0xff]
  %v987 = vld [vmem:[%s3 + $0x378] sm:$0xff]
  %v988 = vld [vmem:[%s3 + $0x39c] sm:$0xff]
  %v989 = vld [vmem:[%s3 + $0x3c0] sm:$0xff]
  %v990 = vld [vmem:[%s3 + $0x3e4] sm:$0xff]
  %v991 = vld [vmem:[%s3 + $0x408] sm:$0xff]
  %v992 = vld [vmem:[%s3 + $0x42c] sm:$0xff]
  %v993 = vld [vmem:[%s3 + $0x450] sm:$0xff]
  %v994 = vld [vmem:[%s3 + $0x474] sm:$0xff]
  %v995 = vpack.c.bf16 %v957, %v957
  %v996 = vpack.c.bf16 %v959, %v959
  %v1029 = vunpack.c.l.b16 %v963
  %v1030 = vunpack.c.h.b16 %v963
  %v1031 = vunpack.c.l.b16 %v964
  %v1032 = vunpack.c.h.b16 %v964
  %v1033 = vunpack.c.l.b16 %v965
  %v1034 = vunpack.c.h.b16 %v965
  %v1035 = vunpack.c.l.b16 %v966
  %v1036 = vunpack.c.h.b16 %v966
  %v1037 = vunpack.c.l.b16 %v967
  %v1038 = vunpack.c.h.b16 %v967
  %v1039 = vunpack.c.l.b16 %v968
  %v1040 = vunpack.c.h.b16 %v968
  %v1041 = vunpack.c.l.b16 %v969
  %v1042 = vunpack.c.h.b16 %v969
  %v1043 = vunpack.c.l.b16 %v970
  %v1044 = vunpack.c.h.b16 %v970
  %v1045 = vunpack.c.l.b16 %v971
  %v1046 = vunpack.c.h.b16 %v971
  %v1047 = vunpack.c.l.b16 %v972
  %v1048 = vunpack.c.h.b16 %v972
  %v1049 = vunpack.c.l.b16 %v973
  %v1050 = vunpack.c.h.b16 %v973
  %v1051 = vunpack.c.l.b16 %v974
  %v1052 = vunpack.c.h.b16 %v974
  %v1053 = vunpack.c.l.b16 %v975
  %v1054 = vunpack.c.h.b16 %v975
  %v1055 = vunpack.c.l.b16 %v976
  %v1056 = vunpack.c.h.b16 %v976
  %v1057 = vunpack.c.l.b16 %v977
  %v1058 = vunpack.c.h.b16 %v977
  %v1059 = vunpack.c.l.b16 %v978
  %v1060 = vunpack.c.h.b16 %v978
  %v1061 = vunpack.c.l.b16 %v979
  %v1062 = vunpack.c.h.b16 %v979
  %v1063 = vunpack.c.l.b16 %v980
  %v1064 = vunpack.c.h.b16 %v980
  %v1065 = vunpack.c.l.b16 %v981
  %v1066 = vunpack.c.h.b16 %v981
  %v1067 = vunpack.c.l.b16 %v982
  %v1068 = vunpack.c.h.b16 %v982
  %v1069 = vunpack.c.l.b16 %v983
  %v1070 = vunpack.c.h.b16 %v983
  %v1071 = vunpack.c.l.b16 %v984
  %v1072 = vunpack.c.h.b16 %v984
  %v1073 = vunpack.c.l.b16 %v985
  %v1074 = vunpack.c.h.b16 %v985
  %v1075 = vunpack.c.l.b16 %v986
  %v1076 = vunpack.c.h.b16 %v986
  %v1077 = vunpack.c.l.b16 %v987
  %v1078 = vunpack.c.h.b16 %v987
  %v1079 = vunpack.c.l.b16 %v988
  %v1080 = vunpack.c.h.b16 %v988
  %v1081 = vunpack.c.l.b16 %v989
  %v1082 = vunpack.c.h.b16 %v989
  %v1083 = vunpack.c.l.b16 %v990
  %v1084 = vunpack.c.h.b16 %v990
  %v1085 = vunpack.c.l.b16 %v991
  %v1086 = vunpack.c.h.b16 %v991
  %v1087 = vunpack.c.l.b16 %v992
  %v1088 = vunpack.c.h.b16 %v992
  %v1089 = vunpack.c.l.b16 %v993
  %v1090 = vunpack.c.h.b16 %v993
  %v1091 = vunpack.c.l.b16 %v994
  %v1092 = vunpack.c.h.b16 %v994
  %v1093 = vpack.c.b16 %v1031, %v1029
  %v1094 = vpack.c.b16 %v1032, %v1030
  %v1095 = vpack.c.b16 %v1035, %v1033
  %v1096 = vpack.c.b16 %v1036, %v1034
  %v1097 = vpack.c.b16 %v1039, %v1037
  %v1098 = vpack.c.b16 %v1040, %v1038
  %v1099 = vpack.c.b16 %v1043, %v1041
  %v1100 = vpack.c.b16 %v1044, %v1042
  %v1101 = vpack.c.b16 %v1047, %v1045
  %v1102 = vpack.c.b16 %v1048, %v1046
  %v1103 = vpack.c.b16 %v1051, %v1049
  %v1104 = vpack.c.b16 %v1052, %v1050
  %v1105 = vpack.c.b16 %v1055, %v1053
  %v1106 = vpack.c.b16 %v1056, %v1054
  %v1107 = vpack.c.b16 %v1059, %v1057
  %v1108 = vpack.c.b16 %v1060, %v1058
  %v1109 = vpack.c.b16 %v1063, %v1061
  %v1110 = vpack.c.b16 %v1064, %v1062
  %v1111 = vpack.c.b16 %v1067, %v1065
  %v1112 = vpack.c.b16 %v1068, %v1066
  %v1113 = vpack.c.b16 %v1071, %v1069
  %v1114 = vpack.c.b16 %v1072, %v1070
  %v1115 = vpack.c.b16 %v1075, %v1073
  %v1116 = vpack.c.b16 %v1076, %v1074
  %v1117 = vpack.c.b16 %v1079, %v1077
  %v1118 = vpack.c.b16 %v1080, %v1078
  %v1119 = vpack.c.b16 %v1083, %v1081
  %v1120 = vpack.c.b16 %v1084, %v1082
  %v1121 = vpack.c.b16 %v1087, %v1085
  %v1122 = vpack.c.b16 %v1088, %v1086
  %v1123 = vpack.c.b16 %v1091, %v1089
  %v1124 = vpack.c.b16 %v1092, %v1090
  %1157 = vmatprep.subr.bf16.mxu0 %v1094
  %1158 = vmatpush1.bf16.msra.mxu0 %v1093
  %1159 = vmatprep.subr.bf16.mxu0 %v1096
  %1160 = vmatpush1.bf16.msra.mxu0 %v1095
  %1161 = vmatprep.subr.bf16.mxu0 %v1098
  %1162 = vmatpush1.bf16.msra.mxu0 %v1097
  %1163 = vmatprep.subr.bf16.mxu0 %v1100
  %1164 = vmatpush1.bf16.msra.mxu0 %v1099
  %1165 = vmatprep.subr.bf16.mxu0 %v1102
  %1166 = vmatpush1.bf16.msra.mxu0 %v1101
  %1167 = vmatprep.subr.bf16.mxu0 %v1104
  %1168 = vmatpush1.bf16.msra.mxu0 %v1103
  %1169 = vmatprep.subr.bf16.mxu0 %v1106
  %1170 = vmatpush1.bf16.msra.mxu0 %v1105
  %1171 = vmatprep.subr.bf16.mxu0 %v1108
  %1172 = vmatpush1.bf16.msra.mxu0 %v1107
  %1173 = vmatprep.subr.bf16.mxu0 %v1110
  %1174 = vmatpush1.bf16.msra.mxu0 %v1109
  %1175 = vmatprep.subr.bf16.mxu0 %v1112
  %1176 = vmatpush1.bf16.msra.mxu0 %v1111
  %1177 = vmatprep.subr.bf16.mxu0 %v1114
  %1178 = vmatpush1.bf16.msra.mxu0 %v1113
  %1179 = vmatprep.subr.bf16.mxu0 %v1116
  %1180 = vmatpush1.bf16.msra.mxu0 %v1115
  %1181 = vmatprep.subr.bf16.mxu0 %v1118
  %1182 = vmatpush1.bf16.msra.mxu0 %v1117
  %1183 = vmatprep.subr.bf16.mxu0 %v1120
  %1184 = vmatpush1.bf16.msra.mxu0 %v1119
  %1185 = vmatprep.subr.bf16.mxu0 %v1122
  %1186 = vmatpush1.bf16.msra.mxu0 %v1121
  %1187 = vmatprep.subr.bf16.mxu0 %v1124
  %1188 = vmatpush1.bf16.msra.mxu0 %v1123
  %1189 = vmatprep.mubr.bf16.mxu0 %v996
  %1190 = vmatmul.mubr.bf16.gmra.mrb[0].mxu0 %v995
  %v1191 = vpop.f32.mrb[0].mxu0
  %v1192 = vadd.f32 0.0, %v1191
  %v1193 = vpop.f32.mrb[0].mxu0
  %v1194 = vadd.f32 0.0, %v1193
  %v1195 = vpop.f32.mrb[0].mxu0
  %v1196 = vpop.f32.mrb[0].mxu0
  %1197 = vdwg.mxu0
  %v1198 = vsub.f32 %v957, %v1192
  %v1199 = vsub.f32 %v959, %v1194
  %v1200 = vmul.f32 %v1198, %v1198
  %v1201 = vmul.f32 %v1199, %v1199
  %v1202 = vpack.c.bf16 %v1200, %v1200
  %v1203 = vpack.c.bf16 %v1201, %v1201
  %1204 = vmatprep.subr.bf16.mxu0 %v1094
  %1205 = vmatpush1.bf16.msra.mxu0 %v1093
  %1206 = vmatprep.subr.bf16.mxu0 %v1096
  %1207 = vmatpush1.bf16.msra.mxu0 %v1095
  %1208 = vmatprep.subr.bf16.mxu0 %v1098
  %1209 = vmatpush1.bf16.msra.mxu0 %v1097
  %1210 = vmatprep.subr.bf16.mxu0 %v1100
  %1211 = vmatpush1.bf16.msra.mxu0 %v1099
  %1212 = vmatprep.subr.bf16.mxu0 %v1102
  %1213 = vmatpush1.bf16.msra.mxu0 %v1101
  %1214 = vmatprep.subr.bf16.mxu0 %v1104
  %1215 = vmatpush1.bf16.msra.mxu0 %v1103
  %1216 = vmatprep.subr.bf16.mxu0 %v1106
  %1217 = vmatpush1.bf16.msra.mxu0 %v1105
  %1218 = vmatprep.subr.bf16.mxu0 %v1108
  %1219 = vmatpush1.bf16.msra.mxu0 %v1107
  %1220 = vmatprep.subr.bf16.mxu0 %v1110
  %1221 = vmatpush1.bf16.msra.mxu0 %v1109
  %1222 = vmatprep.subr.bf16.mxu0 %v1112
  %1223 = vmatpush1.bf16.msra.mxu0 %v1111
  %1224 = vmatprep.subr.bf16.mxu0 %v1114
  %1225 = vmatpush1.bf16.msra.mxu0 %v1113
  %1226 = vmatprep.subr.bf16.mxu0 %v1116
  %1227 = vmatpush1.bf16.msra.mxu0 %v1115
  %1228 = vmatprep.subr.bf16.mxu0 %v1118
  %1229 = vmatpush1.bf16.msra.mxu0 %v1117
  %1230 = vmatprep.subr.bf16.mxu0 %v1120
  %1231 = vmatpush1.bf16.msra.mxu0 %v1119
  %1232 = vmatprep.subr.bf16.mxu0 %v1122
  %1233 = vmatpush1.bf16.msra.mxu0 %v1121
  %1234 = vmatprep.subr.bf16.mxu0 %v1124
  %1235 = vmatpush1.bf16.msra.mxu0 %v1123
  %1236 = vmatprep.mubr.bf16.mxu0 %v1203
  %1237 = vmatmul.mubr.bf16.gmra.mrb[0].mxu0 %v1202
  %v1238 = vpop.f32.mrb[0].mxu0
  %v1239 = vadd.f32 0.0, %v1238
  %v1240 = vpop.f32.mrb[0].mxu0
  %v1241 = vadd.f32 0.0, %v1240
  %v1242 = vpop.f32.mrb[0].mxu0
  %v1243 = vpop.f32.mrb[0].mxu0
  %1244 = vdwg.mxu0
  %v1245 = vmax.f32 %v1239, 0.0
  %v1246 = vmax.f32 %v1241, 0.0
  %v1247 = vadd.f32 %v1245, 1e-05
  %v1248 = vadd.f32 %v1246, 1e-05
  %v1249 = vrsqrt.pop %v1247
  %v1250 = vrsqrt.pop %v1248
  %v1251 = vmul.f32 %v1198, %v1249
  %v1252 = vmul.f32 %v1199, %v1250
  %vm1253 = vcmp.gt.f32.partialorder %v1251, 0.0
  %vm1254 = vcmp.gt.f32.partialorder %v1252, 0.0
  %v1255 = vmul.f32 %v1251, 0.2
  %v1256 = vmul.f32 %v1252, 0.2
  %v1257 = vsel %vm1253, %v1251, %v1255
  %v1258 = vsel %vm1254, %v1252, %v1256
  %v1259 = vpack.c.bf16 %v1257, %v1257
  %v1260 = vpack.c.bf16 %v1258, %v1258
  %v1261 = vld [vmem:[%s3 + $0x20] sm:$0xf]
  %v1262 = vld [vmem:[%s3 + $0x44] sm:$0xf]
  %v1263 = vld [vmem:[%s3 + $0x68] sm:$0xf]
  %v1264 = vld [vmem:[%s3 + $0x8c] sm:$0xf]
  %v1265 = vld [vmem:[%s3 + $0xb0] sm:$0xf]
  %v1266 = vld [vmem:[%s3 + $0xd4] sm:$0xf]
  %v1267 = vld [vmem:[%s3 + $0xf8] sm:$0xf]
  %v1268 = vld [vmem:[%s3 + $0x11c] sm:$0xf]
  %v1269 = vld [vmem:[%s3 + $0x140] sm:$0xf]
  %v1270 = vld [vmem:[%s3 + $0x164] sm:$0xf]
  %v1271 = vld [vmem:[%s3 + $0x188] sm:$0xf]
  %v1272 = vld [vmem:[%s3 + $0x1ac] sm:$0xf]
  %v1273 = vld [vmem:[%s3 + $0x1d0] sm:$0xf]
  %v1274 = vld [vmem:[%s3 + $0x1f4] sm:$0xf]
  %v1275 = vld [vmem:[%s3 + $0x218] sm:$0xf]
  %v1276 = vld [vmem:[%s3 + $0x23c] sm:$0xf]
  %v1277 = vld [vmem:[%s3 + $0x260] sm:$0xf]
  %v1278 = vld [vmem:[%s3 + $0x284] sm:$0xf]
  %v1279 = vld [vmem:[%s3 + $0x2a8] sm:$0xf]
  %v1280 = vld [vmem:[%s3 + $0x2cc] sm:$0xf]
  %v1281 = vld [vmem:[%s3 + $0x2f0] sm:$0xf]
  %v1282 = vld [vmem:[%s3 + $0x314] sm:$0xf]
  %v1283 = vld [vmem:[%s3 + $0x338] sm:$0xf]
  %v1284 = vld [vmem:[%s3 + $0x35c] sm:$0xf]
  %v1285 = vld [vmem:[%s3 + $0x380] sm:$0xf]
  %v1286 = vld [vmem:[%s3 + $0x3a4] sm:$0xf]
  %v1287 = vld [vmem:[%s3 + $0x3c8] sm:$0xf]
  %v1288 = vld [vmem:[%s3 + $0x3ec] sm:$0xf]
  %v1289 = vld [vmem:[%s3 + $0x410] sm:$0xf]
  %v1290 = vld [vmem:[%s3 + $0x434] sm:$0xf]
  %v1291 = vld [vmem:[%s3 + $0x458] sm:$0xf]
  %v1292 = vld [vmem:[%s3 + $0x47c] sm:$0xf]
  %v1325 = vunpack.c.l.b16 %v1261
  %v1326 = vunpack.c.l.b16 %v1262
  %v1327 = vunpack.c.l.b16 %v1263
  %v1328 = vunpack.c.l.b16 %v1264
  %v1329 = vunpack.c.l.b16 %v1265
  %v1330 = vunpack.c.l.b16 %v1266
  %v1331 = vunpack.c.l.b16 %v1267
  %v1332 = vunpack.c.l.b16 %v1268
  %v1333 = vunpack.c.l.b16 %v1269
  %v1334 = vunpack.c.l.b16 %v1270
  %v1335 = vunpack.c.l.b16 %v1271
  %v1336 = vunpack.c.l.b16 %v1272
  %v1337 = vunpack.c.l.b16 %v1273
  %v1338 = vunpack.c.l.b16 %v1274
  %v1339 = vunpack.c.l.b16 %v1275
  %v1340 = vunpack.c.l.b16 %v1276
  %v1341 = vunpack.c.l.b16 %v1277
  %v1342 = vunpack.c.l.b16 %v1278
  %v1343 = vunpack.c.l.b16 %v1279
  %v1344 = vunpack.c.l.b16 %v1280
  %v1345 = vunpack.c.l.b16 %v1281
  %v1346 = vunpack.c.l.b16 %v1282
  %v1347 = vunpack.c.l.b16 %v1283
  %v1348 = vunpack.c.l.b16 %v1284
  %v1349 = vunpack.c.l.b16 %v1285
  %v1350 = vunpack.c.l.b16 %v1286
  %v1351 = vunpack.c.l.b16 %v1287
  %v1352 = vunpack.c.l.b16 %v1288
  %v1353 = vunpack.c.l.b16 %v1289
  %v1354 = vunpack.c.l.b16 %v1290
  %v1355 = vunpack.c.l.b16 %v1291
  %v1356 = vunpack.c.l.b16 %v1292
  %v1357 = vpack.c.b16 %v1326, %v1325
  %v1358 = vpack.c.b16 %v1328, %v1327
  %v1359 = vpack.c.b16 %v1330, %v1329
  %v1360 = vpack.c.b16 %v1332, %v1331
  %v1361 = vpack.c.b16 %v1334, %v1333
  %v1362 = vpack.c.b16 %v1336, %v1335
  %v1363 = vpack.c.b16 %v1338, %v1337
  %v1364 = vpack.c.b16 %v1340, %v1339
  %v1365 = vpack.c.b16 %v1342, %v1341
  %v1366 = vpack.c.b16 %v1344, %v1343
  %v1367 = vpack.c.b16 %v1346, %v1345
  %v1368 = vpack.c.b16 %v1348, %v1347
  %v1369 = vpack.c.b16 %v1350, %v1349
  %v1370 = vpack.c.b16 %v1352, %v1351
  %v1371 = vpack.c.b16 %v1354, %v1353
  %v1372 = vpack.c.b16 %v1356, %v1355
  %1389 = vmatprep.subr.bf16.mxu0 0
  %1390 = vmatpush1.bf16.msra.mxu0 %v1357
  %1391 = vmatprep.subr.bf16.mxu0 0
  %1392 = vmatpush1.bf16.msra.mxu0 %v1358
  %1393 = vmatprep.subr.bf16.mxu0 0
  %1394 = vmatpush1.bf16.msra.mxu0 %v1359
  %1395 = vmatprep.subr.bf16.mxu0 0
  %1396 = vmatpush1.bf16.msra.mxu0 %v1360
  %1397 = vmatprep.subr.bf16.mxu0 0
  %1398 = vmatpush1.bf16.msra.mxu0 %v1361
  %1399 = vmatprep.subr.bf16.mxu0 0
  %1400 = vmatpush1.bf16.msra.mxu0 %v1362
  %1401 = vmatprep.subr.bf16.mxu0 0
  %1402 = vmatpush1.bf16.msra.mxu0 %v1363
  %1403 = vmatprep.subr.bf16.mxu0 0
  %1404 = vmatpush1.bf16.msra.mxu0 %v1364
  %1405 = vmatprep.subr.bf16.mxu0 0
  %1406 = vmatpush1.bf16.msra.mxu0 %v1365
  %1407 = vmatprep.subr.bf16.mxu0 0
  %1408 = vmatpush1.bf16.msra.mxu0 %v1366
  %1409 = vmatprep.subr.bf16.mxu0 0
  %1410 = vmatpush1.bf16.msra.mxu0 %v1367
  %1411 = vmatprep.subr.bf16.mxu0 0
  %1412 = vmatpush1.bf16.msra.mxu0 %v1368
  %1413 = vmatprep.subr.bf16.mxu0 0
  %1414 = vmatpush1.bf16.msra.mxu0 %v1369
  %1415 = vmatprep.subr.bf16.mxu0 0
  %1416 = vmatpush1.bf16.msra.mxu0 %v1370
  %1417 = vmatprep.subr.bf16.mxu0 0
  %1418 = vmatpush1.bf16.msra.mxu0 %v1371
  %1419 = vmatprep.subr.bf16.mxu0 0
  %1420 = vmatpush1.bf16.msra.mxu0 %v1372
  %1421 = vmatprep.mubr.bf16.mxu0 %v1260
  %1422 = vmatmul.mubr.bf16.gmra.mrb[0].mxu0 %v1259
  %v1423 = vpop.f32.mrb[0].mxu0
  %v1424 = vadd.f32 0.0, %v1423
  %v1425 = vpop.f32.mrb[0].mxu0
  %v1426 = vpop.f32.mrb[0].mxu0
  %v1427 = vpop.f32.mrb[0].mxu0
  %1428 = vdwg.mxu0
  %v1429 = vpack.c.bf16 %v1424, %v1424
  %v1430 = vld [vmem:[%s4] sm:$0xf]
  %v1431 = vld [vmem:[%s4 + $0x8] sm:$0xf]
  %v1432 = vld [vmem:[%s4 + $0x10] sm:$0xf]
  %v1433 = vld [vmem:[%s4 + $0x18] sm:$0xf]
  %v1434 = vld [vmem:[%s4 + $0x20] sm:$0xf]
  %v1435 = vld [vmem:[%s4 + $0x28] sm:$0xf]
  %v1436 = vld [vmem:[%s4 + $0x30] sm:$0xf]
  %v1437 = vld [vmem:[%s4 + $0x38] sm:$0xf]
  %v1438 = vld [vmem:[%s4 + $0x40] sm:$0xf]
  %v1439 = vld [vmem:[%s4 + $0x48] sm:$0xf]
  %v1440 = vld [vmem:[%s4 + $0x50] sm:$0xf]
  %v1441 = vld [vmem:[%s4 + $0x58] sm:$0xf]
  %v1442 = vld [vmem:[%s4 + $0x60] sm:$0xf]
  %v1443 = vld [vmem:[%s4 + $0x68] sm:$0xf]
  %v1444 = vld [vmem:[%s4 + $0x70] sm:$0xf]
  %v1445 = vld [vmem:[%s4 + $0x78] sm:$0xf]
  %v1446 = vld [vmem:[%s1 + $0x6] sm:$0x1]
  %v1448 = vlaneseq
  %v1449 = vshrl.u32 %v1448, 7
  %v1450 = vsub.s32 0, %v1449
  %v1451 = vrot.slane %v1446, %v1450
  %v1469 = vunpack.c.l.b16 %v1430
  %v1470 = vunpack.c.l.b16 %v1431
  %v1471 = vunpack.c.l.b16 %v1432
  %v1472 = vunpack.c.l.b16 %v1433
  %v1473 = vunpack.c.l.b16 %v1434
  %v1474 = vunpack.c.l.b16 %v1435
  %v1475 = vunpack.c.l.b16 %v1436
  %v1476 = vunpack.c.l.b16 %v1437
  %v1477 = vunpack.c.l.b16 %v1438
  %v1478 = vunpack.c.l.b16 %v1439
  %v1479 = vunpack.c.l.b16 %v1440
  %v1480 = vunpack.c.l.b16 %v1441
  %v1481 = vunpack.c.l.b16 %v1442
  %v1482 = vunpack.c.l.b16 %v1443
  %v1483 = vunpack.c.l.b16 %v1444
  %v1484 = vunpack.c.l.b16 %v1445
  %v1485 = vpack.c.b16 %v1470, %v1469
  %v1486 = vpack.c.b16 %v1472, %v1471
  %v1487 = vpack.c.b16 %v1474, %v1473
  %v1488 = vpack.c.b16 %v1476, %v1475
  %v1489 = vpack.c.b16 %v1478, %v1477
  %v1490 = vpack.c.b16 %v1480, %v1479
  %v1491 = vpack.c.b16 %v1482, %v1481
  %v1492 = vpack.c.b16 %v1484, %v1483
  %1501 = vmatprep.subr.bf16.mxu0 0
  %1502 = vmatpush1.bf16.msra.mxu0 %v1485
  %1503 = vmatprep.subr.bf16.mxu0 0
  %1504 = vmatpush1.bf16.msra.mxu0 %v1486
  %1505 = vmatprep.subr.bf16.mxu0 0
  %1506 = vmatpush1.bf16.msra.mxu0 %v1487
  %1507 = vmatprep.subr.bf16.mxu0 0
  %1508 = vmatpush1.bf16.msra.mxu0 %v1488
  %1509 = vmatprep.subr.bf16.mxu0 0
  %1510 = vmatpush1.bf16.msra.mxu0 %v1489
  %1511 = vmatprep.subr.bf16.mxu0 0
  %1512 = vmatpush1.bf16.msra.mxu0 %v1490
  %1513 = vmatprep.subr.bf16.mxu0 0
  %1514 = vmatpush1.bf16.msra.mxu0 %v1491
  %1515 = vmatprep.subr.bf16.mxu0 0
  %1516 = vmatpush1.bf16.msra.mxu0 %v1492
  %1517 = vmatprep.subr.bf16.mxu0 0
  %1518 = vmatpush1.bf16.msra.mxu0 0
  %1519 = vmatprep.subr.bf16.mxu0 0
  %1520 = vmatpush1.bf16.msra.mxu0 0
  %1521 = vmatprep.subr.bf16.mxu0 0
  %1522 = vmatpush1.bf16.msra.mxu0 0
  %1523 = vmatprep.subr.bf16.mxu0 0
  %1524 = vmatpush1.bf16.msra.mxu0 0
  %1525 = vmatprep.subr.bf16.mxu0 0
  %1526 = vmatpush1.bf16.msra.mxu0 0
  %1527 = vmatprep.subr.bf16.mxu0 0
  %1528 = vmatpush1.bf16.msra.mxu0 0
  %1529 = vmatprep.subr.bf16.mxu0 0
  %1530 = vmatpush1.bf16.msra.mxu0 0
  %1531 = vmatprep.subr.bf16.mxu0 0
  %1532 = vmatpush1.bf16.msra.mxu0 0
  %1533 = vmatprep.mubr.bf16.mxu0 0
  %1534 = vmatmul.mubr.bf16.gmra.mrb[0].mxu0 %v1429
  %v1535 = vpop.f32.mrb[0].mxu0
  %v1536 = vadd.f32 %v1451, %v1535
  %v1537 = vpop.f32.mrb[0].mxu0
  %v1538 = vpop.f32.mrb[0].mxu0
  %v1539 = vpop.f32.mrb[0].mxu0
  %1540 = vdwg.mxu0
  %v1541 = vmax.f32 %v1536, 0.0
  %v1542 = vpack.c.bf16 %v1541, %v1541
  %v1543 = vld [vmem:[%s4 + $0x4] sm:$0xf]
  %v1544 = vld [vmem:[%s4 + $0xc] sm:$0xf]
  %v1545 = vld [vmem:[%s4 + $0x14] sm:$0xf]
  %v1546 = vld [vmem:[%s4 + $0x1c] sm:$0xf]
  %v1547 = vld [vmem:[%s4 + $0x24] sm:$0xf]
  %v1548 = vld [vmem:[%s4 + $0x2c] sm:$0xf]
  %v1549 = vld [vmem:[%s4 + $0x34] sm:$0xf]
  %v1550 = vld [vmem:[%s4 + $0x3c] sm:$0xf]
  %v1551 = vld [vmem:[%s4 + $0x44] sm:$0xf]
  %v1552 = vld [vmem:[%s4 + $0x4c] sm:$0xf]
  %v1553 = vld [vmem:[%s4 + $0x54] sm:$0xf]
  %v1554 = vld [vmem:[%s4 + $0x5c] sm:$0xf]
  %v1555 = vld [vmem:[%s4 + $0x64] sm:$0xf]
  %v1556 = vld [vmem:[%s4 + $0x6c] sm:$0xf]
  %v1557 = vld [vmem:[%s4 + $0x74] sm:$0xf]
  %v1558 = vld [vmem:[%s4 + $0x7c] sm:$0xf]
  %v1559 = vld [vmem:[%s1 + $0x7] sm:$0x1]
  %v1561 = vlaneseq
  %v1562 = vshrl.u32 %v1561, 7
  %v1563 = vsub.s32 0, %v1562
  %v1564 = vrot.slane %v1559, %v1563
  %v1581 = vunpack.c.l.b16 %v1543
  %v1582 = vunpack.c.l.b16 %v1544
  %v1583 = vunpack.c.l.b16 %v1545
  %v1584 = vunpack.c.l.b16 %v1546
  %v1585 = vunpack.c.l.b16 %v1547
  %v1586 = vunpack.c.l.b16 %v1548
  %v1587 = vunpack.c.l.b16 %v1549
  %v1588 = vunpack.c.l.b16 %v1550
  %v1589 = vunpack.c.l.b16 %v1551
  %v1590 = vunpack.c.l.b16 %v1552
  %v1591 = vunpack.c.l.b16 %v1553
  %v1592 = vunpack.c.l.b16 %v1554
  %v1593 = vunpack.c.l.b16 %v1555
  %v1594 = vunpack.c.l.b16 %v1556
  %v1595 = vunpack.c.l.b16 %v1557
  %v1596 = vunpack.c.l.b16 %v1558
  %v1597 = vpack.c.b16 %v1582, %v1581
  %v1598 = vpack.c.b16 %v1584, %v1583
  %v1599 = vpack.c.b16 %v1586, %v1585
  %v1600 = vpack.c.b16 %v1588, %v1587
  %v1601 = vpack.c.b16 %v1590, %v1589
  %v1602 = vpack.c.b16 %v1592, %v1591
  %v1603 = vpack.c.b16 %v1594, %v1593
  %v1604 = vpack.c.b16 %v1596, %v1595
  %1613 = vrot.lane.b32.xlu0 %v1564, 61
  %v1614 = vpop.permute.xlu0 %1613
  %1616 = vmatprep.subr.bf16.mxu0 0
  %1617 = vmatpush1.bf16.msra.mxu0 %v1597
  %1618 = vmatprep.subr.bf16.mxu0 0
  %1619 = vmatpush1.bf16.msra.mxu0 %v1598
  %1620 = vmatprep.subr.bf16.mxu0 0
  %1621 = vmatpush1.bf16.msra.mxu0 %v1599
  %1622 = vmatprep.subr.bf16.mxu0 0
  %1623 = vmatpush1.bf16.msra.mxu0 %v1600
  %1624 = vmatprep.subr.bf16.mxu0 0
  %1625 = vmatpush1.bf16.msra.mxu0 %v1601
  %1626 = vmatprep.subr.bf16.mxu0 0
  %1627 = vmatpush1.bf16.msra.mxu0 %v1602
  %1628 = vmatprep.subr.bf16.mxu0 0
  %1629 = vmatpush1.bf16.msra.mxu0 %v1603
  %1630 = vmatprep.subr.bf16.mxu0 0
  %1631 = vmatpush1.bf16.msra.mxu0 %v1604
  %1632 = vmatprep.subr.bf16.mxu0 0
  %1633 = vmatpush1.bf16.msra.mxu0 0
  %1634 = vmatprep.subr.bf16.mxu0 0
  %1635 = vmatpush1.bf16.msra.mxu0 0
  %1636 = vmatprep.subr.bf16.mxu0 0
  %1637 = vmatpush1.bf16.msra.mxu0 0
  %1638 = vmatprep.subr.bf16.mxu0 0
  %1639 = vmatpush1.bf16.msra.mxu0 0
  %1640 = vmatprep.subr.bf16.mxu0 0
  %1641 = vmatpush1.bf16.msra.mxu0 0
  %1642 = vmatprep.subr.bf16.mxu0 0
  %1643 = vmatpush1.bf16.msra.mxu0 0
  %1644 = vmatprep.subr.bf16.mxu0 0
  %1645 = vmatpush1.bf16.msra.mxu0 0
  %1646 = vmatprep.subr.bf16.mxu0 0
  %1647 = vmatpush1.bf16.msra.mxu0 0
  %1648 = vmatprep.mubr.bf16.mxu0 0
  %1649 = vmatmul.mubr.bf16.gmra.mrb[0].mxu0 %v1542
  %v1650 = vpop.f32.mrb[0].mxu0
  %v1651 = vadd.f32 %v1614, %v1650
  %v1652 = vpop.f32.mrb[0].mxu0
  %v1653 = vpop.f32.mrb[0].mxu0
  %v1654 = vpop.f32.mrb[0].mxu0
  %1655 = vdwg.mxu0
  %v1656 = vxor.u32 %v1651, 2147483648
  %v1657 = vmul.f32 %v1656, 1.442695
  %v1658 = vpow.pop %v1657
  %v1659 = vadd.f32 %v1658, 1.0
  %v1660 = vrcp.pop %v1659
  %v1661 = vmul.f32 1.0, %v1660
  %v1662 = vld [vmem:[%s2 + $0x8] sm:$0xf]
  %v1663 = vld [vmem:[%s2 + $0x14] sm:$0xf]
  %v1664 = vld [vmem:[%s2 + $0x20] sm:$0xf]
  %v1665 = vld [vmem:[%s2 + $0x2c] sm:$0xf]
  %v1666 = vld [vmem:[%s2 + $0x38] sm:$0xf]
  %v1667 = vld [vmem:[%s2 + $0x44] sm:$0xf]
  %v1668 = vld [vmem:[%s2 + $0x50] sm:$0xf]
  %v1669 = vld [vmem:[%s2 + $0x5c] sm:$0xf]
  %v1679 = vunpack.c.l.b16 %v1662
  %v1680 = vunpack.c.l.b16 %v1663
  %v1681 = vunpack.c.l.b16 %v1664
  %v1682 = vunpack.c.l.b16 %v1665
  %v1683 = vunpack.c.l.b16 %v1666
  %v1684 = vunpack.c.l.b16 %v1667
  %v1685 = vunpack.c.l.b16 %v1668
  %v1686 = vunpack.c.l.b16 %v1669
  %v1687 = vpack.c.b16 %v1680, %v1679
  %v1688 = vpack.c.b16 %v1682, %v1681
  %v1689 = vpack.c.b16 %v1684, %v1683
  %v1690 = vpack.c.b16 %v1686, %v1685
  %1695 = vmatprep.subr.bf16.mxu0 0
  %1696 = vmatpush1.bf16.msra.mxu0 %v1687
  %1697 = vmatprep.subr.bf16.mxu0 0
  %1698 = vmatpush1.bf16.msra.mxu0 %v1688
  %1699 = vmatprep.subr.bf16.mxu0 0
  %1700 = vmatpush1.bf16.msra.mxu0 %v1689
  %1701 = vmatprep.subr.bf16.mxu0 0
  %1702 = vmatpush1.bf16.msra.mxu0 %v1690
  %1703 = vmatprep.subr.bf16.mxu0 0
  %1704 = vmatpush1.bf16.msra.mxu0 0
  %1705 = vmatprep.subr.bf16.mxu0 0
  %1706 = vmatpush1.bf16.msra.mxu0 0
  %1707 = vmatprep.subr.bf16.mxu0 0
  %1708 = vmatpush1.bf16.msra.mxu0 0
  %1709 = vmatprep.subr.bf16.mxu0 0
  %1710 = vmatpush1.bf16.msra.mxu0 0
  %1711 = vmatprep.subr.bf16.mxu0 0
  %1712 = vmatpush1.bf16.msra.mxu0 0
  %1713 = vmatprep.subr.bf16.mxu0 0
  %1714 = vmatpush1.bf16.msra.mxu0 0
  %1715 = vmatprep.subr.bf16.mxu0 0
  %1716 = vmatpush1.bf16.msra.mxu0 0
  %1717 = vmatprep.subr.bf16.mxu0 0
  %1718 = vmatpush1.bf16.msra.mxu0 0
  %1719 = vmatprep.subr.bf16.mxu0 0
  %1720 = vmatpush1.bf16.msra.mxu0 0
  %1721 = vmatprep.subr.bf16.mxu0 0
  %1722 = vmatpush1.bf16.msra.mxu0 0
  %1723 = vmatprep.subr.bf16.mxu0 0
  %1724 = vmatpush1.bf16.msra.mxu0 0
  %1725 = vmatprep.subr.bf16.mxu0 0
  %1726 = vmatpush1.bf16.msra.mxu0 0
  %1727 = vmatprep.mubr.bf16.mxu0 0
  %1728 = vmatmul.mubr.bf16.gmra.mrb[0].mxu0 %v124
  %v1729 = vpop.f32.mrb[0].mxu0
  %v1730 = vadd.f32 %v1564, %v1729
  %v1731 = vpop.f32.mrb[0].mxu0
  %v1732 = vpop.f32.mrb[0].mxu0
  %v1733 = vpop.f32.mrb[0].mxu0
  %1734 = vdwg.mxu0
  %v1735 = vpack.c.bf16 %v1730, %v1730
  %1736 = vrot.lane.b32.xlu0 %v1687, 64
  %v1737 = vpop.permute.xlu0 %1736
  %1738 = vrot.lane.b32.xlu0 %v1688, 64
  %v1739 = vpop.permute.xlu0 %1738
  %1740 = vrot.lane.b32.xlu0 %v1689, 64
  %v1741 = vpop.permute.xlu0 %1740
  %1742 = vrot.lane.b32.xlu0 %v1690, 64
  %v1743 = vpop.permute.xlu0 %1742
  %v1749 = vsel %vm47, %v1735, 0
  %1751 = vmatprep.subr.bf16.mxu0 0
  %1752 = vmatpush1.bf16.msra.mxu0 %v1737
  %1753 = vmatprep.subr.bf16.mxu0 0
  %1754 = vmatpush1.bf16.msra.mxu0 %v1739
  %1755 = vmatprep.subr.bf16.mxu0 0
  %1756 = vmatpush1.bf16.msra.mxu0 %v1741
  %1757 = vmatprep.subr.bf16.mxu0 0
  %1758 = vmatpush1.bf16.msra.mxu0 %v1743
  %1759 = vmatprep.subr.bf16.mxu0 0
  %1760 = vmatpush1.bf16.msra.mxu0 0
  %1761 = vmatprep.subr.bf16.mxu0 0
  %1762 = vmatpush1.bf16.msra.mxu0 0
  %1763 = vmatprep.subr.bf16.mxu0 0
  %1764 = vmatpush1.bf16.msra.mxu0 0
  %1765 = vmatprep.subr.bf16.mxu0 0
  %1766 = vmatpush1.bf16.msra.mxu0 0
  %1767 = vmatprep.subr.bf16.mxu0 0
  %1768 = vmatpush1.bf16.msra.mxu0 0
  %1769 = vmatprep.subr.bf16.mxu0 0
  %1770 = vmatpush1.bf16.msra.mxu0 0
  %1771 = vmatprep.subr.bf16.mxu0 0
  %1772 = vmatpush1.bf16.msra.mxu0 0
  %1773 = vmatprep.subr.bf16.mxu0 0
  %1774 = vmatpush1.bf16.msra.mxu0 0
  %1775 = vmatprep.subr.bf16.mxu0 0
  %1776 = vmatpush1.bf16.msra.mxu0 0
  %1777 = vmatprep.subr.bf16.mxu0 0
  %1778 = vmatpush1.bf16.msra.mxu0 0
  %1779 = vmatprep.subr.bf16.mxu0 0
  %1780 = vmatpush1.bf16.msra.mxu0 0
  %1781 = vmatprep.subr.bf16.mxu0 0
  %1782 = vmatpush1.bf16.msra.mxu0 0
  %1783 = vmatprep.mubr.bf16.mxu0 0
  %1784 = vmatmul.mubr.bf16.gmra.mrb[0].mxu0 %v1749
  %v1785 = vpop.f32.mrb[0].mxu0
  %v1786 = vadd.f32 0.0, %v1785
  %v1787 = vpop.f32.mrb[0].mxu0
  %v1788 = vpop.f32.mrb[0].mxu0
  %v1789 = vpop.f32.mrb[0].mxu0
  %1790 = vdwg.mxu0
  %1791 = vrot.lane.b32.xlu0 %v1564, 64
  %v1792 = vpop.permute.xlu0 %1791
  %v1794 = vadd.f32 %v1786, %v1792
  %vm1795 = vcmask 23552
  %v1796 = vsel %vm1795, %v1794, -inf
  %1797 = vmax.xlane.f32.xlu0 %v1796
  %v1798 = vpop.xlane.xlu0 %1797
  %v1799 = vsub.f32 %v1794, %v1798
  %v1800 = vmul.f32 %v1799, 1.442695
  %v1801 = vpow.pop %v1800
  %v1802 = vsel %vm1795, %v1801, 0.0
  %1803 = vadd.xlane.f32.xlu0 %v1802
  %v1804 = vpop.xlane.xlu0 %1803
  %v1805 = vlog2.pop %v1804
  %v1806 = vmul.f32 %v1805, 0.6931472
  %v1807 = vadd.f32 %v1798, %v1806
  %v1808 = vsub.f32 %v1794, %v1807
  %1810 = vrot.lane.b32.xlu0 %v1661, 64
  %v1811 = vpop.permute.xlu0 %1810
  %1814 = vrot.lane.b32.xlu0 %v1808, 65
  %v1815 = vpop.permute.xlu0 %1814
  %v1817 = vsel %vm47, %v61, %v1811
  %vm1818 = vcmask 531456
  %v1819 = vsel %vm1818, %v1817, %v1815
  %vm1820 = vcmask 556032
  %v1821 = vsel %vm1820, %v1819, 0.0
  %1822 = vst [vmem:[%s5] sm:$0xff] %v48
  %1823 = vst [vmem:[%s5 + $0x8] sm:$0xff] %v1821
  // Predicated region
  $region22: #{model_forward_train.3} parent=0 // pred_check
    _
  $region23: #{model_forward_train.3} parent=0 // pred_check_branch
    %1825 = sbr.rel (0) target = $region25
  $region24: #{model_forward_train.3} parent=0 // pred_region
    _
  $region25: #{model_forward_train.3} parent=0 // pred_fallthru
    _
  // Predicated region
  $region26: #{model_forward_train.3} parent=0 // pred_check
    _
  $region27: #{model_forward_train.3} parent=0 // pred_check_branch
    %1827 = sbr.rel (0) target = $region29
  $region28: #{model_forward_train.3} parent=0 // pred_region
    _
  $region29: #{model_forward_train.3} parent=0 // pred_fallthru
    _

</llo_original>
